<compile_context>
chip_gen: v5e
topology: v5e:2x2
jax: 0.10.0
libtpu: 0.0.40
codegen_flags: <defaults>
</compile_context>

<pallas_src>
import functools

import jax
import jax.numpy as jnp
from jax.experimental import pallas as pl
from jax.experimental.pallas import tpu as pltpu


try:  # generation-aware VMEM cap (64 MiB/TC on v7x, 128 MiB on v5e/v6e)
    _VMEM_CAP = int(pltpu.get_tpu_info().vmem_capacity_bytes)
except Exception:  # pragma: no cover - conservative fallback
    _VMEM_CAP = 64 * 1024 * 1024


# ----------------------------------------------------------------------------
# Fused: Linear (fc) + depthwise 3x3 conv + BatchNorm2d (train stats) + ReLU
# ----------------------------------------------------------------------------
def _fused_block_kernel(
    x_ref, wl_ref, bl_ref, wd_ref, bd_ref, g_ref, beta_ref,            # inputs
    o_ref,                                                              # output
    hpad_ref, y_ref, ssum_ref, ssq_ref, sh0_ref, scale_ref, off_ref,    # scratch
    *, eps, H, W,
):
    phase = pl.program_id(1)   # 0: matmul + conv + batch stats, 1: BN + ReLU
    ib = pl.program_id(2)      # batch-tile index
    nb = pl.num_programs(2)
    bt, N, tc = o_ref.shape
    cin = x_ref.shape[-1]
    count = nb * bt * N        # elements per channel in the batch statistics
    row0 = pl.multiple_of(ib * bt, bt)

    # ------------- phase 0: fc matmul + depthwise conv + running statistics ----
    @pl.when(phase == 0)
    def _():
        @pl.when(ib == 0)
        def _():
            # Halo-padded staging buffer: interior is rewritten every step, the
            # 1-pixel ring stays zero == SAME padding.  Re-zeroed once per
            # channel tile (cheap; megacore-safe, every core sees ib == 0).
            hpad_ref[...] = jnp.zeros(hpad_ref.shape, hpad_ref.dtype)
            ssum_ref[...] = jnp.zeros(ssum_ref.shape, ssum_ref.dtype)
            ssq_ref[...] = jnp.zeros(ssq_ref.shape, ssq_ref.dtype)

        # fc (nn.Linear): h = x @ W[:, tile] + b[tile].
        # bf16 operands, f32 MXU accumulation (native MXU dtype on all gens).
        xv = x_ref[...].reshape(bt * N, cin).astype(jnp.bfloat16)
        wl = wl_ref[...].astype(jnp.bfloat16)
        h = jnp.dot(xv, wl, preferred_element_type=jnp.float32) + bl_ref[0, :]

        # Stage the fc output in the halo-padded scratch (it has to land
        # somewhere anyway); the 9 conv taps below are static ref slices.
        # TODO(synk): replace with pltpu.roll-based taps to drop this VMEM
        # store + reload round trip.
        hpad_ref[:, 1:H + 1, 1:W + 1, :] = h.reshape(bt, H, W, tc)

        # Depthwise 3x3 conv + conv bias: 9 unrolled VPU multiply-adds.
        acc = jnp.zeros((bt, H, W, tc), jnp.float32)
        for kh in range(3):
            for kw in range(3):
                acc = acc + hpad_ref[:, kh:kh + H, kw:kw + W, :] * wd_ref[kh, kw, :]
        acc = (acc + bd_ref[0, :]).reshape(bt, N, tc)

        # Conv output stays resident in VMEM for phase 1 (no HBM round trip).
        y_ref[pl.ds(row0, bt)] = acc

        # Single-pass BN batch statistics with a shifted sum of squares
        # (shift = first tile's per-channel mean; exactly centered when nb==1).
        @pl.when(ib == 0)
        def _():
            s0 = jnp.sum(jnp.sum(acc, axis=0), axis=0, keepdims=True)
            sh0_ref[...] = s0 * (1.0 / (bt * N))

        yc = acc - sh0_ref[0, :]
        ssum_ref[...] += jnp.sum(jnp.sum(yc, axis=0), axis=0, keepdims=True)
        ssq_ref[...] += jnp.sum(jnp.sum(yc * yc, axis=0), axis=0, keepdims=True)

        @pl.when(ib == nb - 1)
        def _():
            dmean = ssum_ref[...] * (1.0 / count)                 # mean - shift
            var = ssq_ref[...] * (1.0 / count) - dmean * dmean    # biased, as BN uses
            mean = dmean + sh0_ref[...]
            sc = g_ref[...] * jax.lax.rsqrt(var + eps)
            scale_ref[...] = sc
            off_ref[...] = beta_ref[...] - mean * sc

    # ------------- phase 1: normalize + ReLU, write lane-dense output ----------
    @pl.when(phase == 1)
    def _():
        y = y_ref[pl.ds(row0, bt)]
        o_ref[...] = jnp.maximum(
            y * scale_ref[0, :] + off_ref[0, :], 0.0).astype(o_ref.dtype)


def kan_block(x, H, W, w_lin, b_lin, w_dw, b_dw, gamma, beta, *,
              eps=1e-5, batch_tile=None, out_dtype=jnp.float32):
    """One fused (Linear -> DWConv3x3 -> BatchNorm(train) -> ReLU) stage.

    x: (B, N, Cin) with N == H*W; w_lin: (Cin, C); w_dw: (3, 3, C);
    b_lin/b_dw/gamma/beta: (C,).  Returns (B, N, C) in out_dtype.
    """
    B, N, Cin = x.shape
    assert N == H * W
    assert w_lin.shape[0] == Cin
    C = w_lin.shape[1]

    # Channel tiling: 128-wide tiles keep stores lane-dense and give the
    # "parallel" megacore axis for production channel counts; small C runs as
    # one tile.  TODO(synk): on v7x (2 TCs/chip) split further when nc == 1 so
    # both TensorCores get work.
    tc = 128 if (C > 128 and C % 128 == 0) else C
    nc = C // tc

    if batch_tile is None:
        # nb >= 2 when possible so the next batch tile's DMA overlaps the conv.
        bt = B // 2 if (B >= 2 and B % 2 == 0) else B
    else:
        bt = batch_tile
    assert B % bt == 0
    nb = B // bt

    # Rough f32 footprint: whole-batch conv scratch + halo buffer + 2x buffered
    # in/out blocks.  TODO(synk): for production B*H*W, cap bt / store y_ref in
    # bf16 so this stays inside v7x's 64 MiB VMEM per TensorCore.
    est = 4 * (B * N * tc
               + bt * (H + 2) * (W + 2) * tc
               + 2 * bt * N * (Cin + tc)) + (1 << 20)
    vmem_limit = int(min(max(2 * est, 32 << 20), int(0.75 * _VMEM_CAP)))

    def x_map(ci, p, ib):
        # x is only consumed in phase 0; pin to the last-fetched block during
        # phase 1 so no extra input DMAs are issued.
        return (jnp.where(p == 0, ib, nb - 1), 0, 0)

    def o_map(ci, p, ib):
        # Output is only written in phase 1; keep the block index constant
        # before that so no uninitialized block is flushed to HBM.  (Even if a
        # premature flush ever happened, the phase-1 write + final flush of the
        # same block would overwrite it, so this is a perf contract only.)
        return (jnp.where(p == 1, ib, 0), 0, ci)

    cvec_map = lambda ci, p, ib: (0, ci)

    out = pl.pallas_call(
        functools.partial(_fused_block_kernel, eps=eps, H=H, W=W),
        out_shape=jax.ShapeDtypeStruct((B, N, C), out_dtype),
        grid=(nc, 2, nb),
        in_specs=[
            pl.BlockSpec((bt, N, Cin), x_map),
            pl.BlockSpec((Cin, tc), lambda ci, p, ib: (0, ci)),
            pl.BlockSpec((1, tc), cvec_map),
            pl.BlockSpec((3, 3, tc), lambda ci, p, ib: (0, 0, ci)),
            pl.BlockSpec((1, tc), cvec_map),
            pl.BlockSpec((1, tc), cvec_map),
            pl.BlockSpec((1, tc), cvec_map),
        ],
        out_specs=pl.BlockSpec((bt, N, tc), o_map),
        scratch_shapes=[
            pltpu.VMEM((bt, H + 2, W + 2, tc), jnp.float32),  # halo-padded fc output
            pltpu.VMEM((B, N, tc), jnp.float32),              # conv output, whole batch
            pltpu.VMEM((1, tc), jnp.float32),                 # shifted channel sum
            pltpu.VMEM((1, tc), jnp.float32),                 # shifted sum of squares
            pltpu.VMEM((1, tc), jnp.float32),                 # shift (first-tile mean)
            pltpu.VMEM((1, tc), jnp.float32),                 # BN scale
            pltpu.VMEM((1, tc), jnp.float32),                 # BN offset
        ],
        compiler_params=pltpu.CompilerParams(
            dimension_semantics=("parallel", "arbitrary", "arbitrary"),
            vmem_limit_bytes=vmem_limit,
        ),
    )(
        x,
        w_lin.astype(jnp.float32),
        b_lin.reshape(1, C).astype(jnp.float32),
        w_dw.astype(jnp.float32),
        b_dw.reshape(1, C).astype(jnp.float32),
        gamma.reshape(1, C).astype(jnp.float32),
        beta.reshape(1, C).astype(jnp.float32),
    )
    return out


# ----------------------------------------------------------------------------
# Full KANLayer forward: fc1 -> DW_bn_relu -> fc2 -> DW_bn_relu (2 pallas_calls)
# ----------------------------------------------------------------------------
def kan_layer_forward(x, H, W, p, eps=1e-5):
    # Inter-stage activation stored in bf16: it is only consumed by the next
    # stage's bf16 MXU matmul, so this halves that HBM hop at identical math.
    h = kan_block(x, H, W, p["w1"], p["b1"], p["dw1_w"], p["dw1_b"],
                  p["bn1_g"], p["bn1_b"], eps=eps, out_dtype=jnp.bfloat16)
    return kan_block(h, H, W, p["w2"], p["b2"], p["dw2_w"], p["dw2_b"],
                     p["bn2_g"], p["bn2_b"], eps=eps, out_dtype=jnp.float32)


# ----------------------------------------------------------------------------
# Pure-JAX references (train-mode BN; bf16 matmul operands to match the kernel's
# deliberate MXU precision choice, f32 everywhere else)
# ----------------------------------------------------------------------------
_PREC = jax.lax.Precision.HIGHEST


def ref_block(x, H, W, w_lin, b_lin, w_dw, b_dw, gamma, beta, eps=1e-5):
    B, N, Cin = x.shape
    C = w_lin.shape[1]
    h = jnp.dot(x.reshape(B * N, Cin).astype(jnp.bfloat16),
                w_lin.astype(jnp.bfloat16),
                preferred_element_type=jnp.float32) + b_lin
    y = jax.lax.conv_general_dilated(
        h.reshape(B, H, W, C),
        w_dw.reshape(3, 3, 1, C).astype(jnp.float32),
        window_strides=(1, 1), padding="SAME",
        dimension_numbers=("NHWC", "HWIO", "NHWC"), feature_group_count=C,
        precision=_PREC) + b_dw
    mean = y.mean(axis=(0, 1, 2))
    var = y.var(axis=(0, 1, 2))        # biased, as BN's normalization uses
    yn = (y - mean) * (gamma / jnp.sqrt(var + eps)) + beta
    return jnp.maximum(yn, 0.0).reshape(B, N, C)


def ref_kan_layer(x, H, W, p, eps=1e-5):
    h = ref_block(x, H, W, p["w1"], p["b1"], p["dw1_w"], p["dw1_b"],
                  p["bn1_g"], p["bn1_b"], eps)
    return ref_block(h, H, W, p["w2"], p["b2"], p["dw2_w"], p["dw2_b"],
                     p["bn2_g"], p["bn2_b"], eps)


if __name__ == "__main__":
    B, H, W = 2, 8, 8
    N = H * W
    Cin, Chid, Cout = 32, 64, 32

    k = jax.random.split(jax.random.PRNGKey(0), 13)
    x = jax.random.normal(k[0], (B, N, Cin), jnp.float32)
    params = dict(
        w1=jax.random.normal(k[1], (Cin, Chid), jnp.float32) * 0.1,
        b1=jax.random.normal(k[2], (Chid,), jnp.float32) * 0.1,
        dw1_w=jax.random.normal(k[3], (3, 3, Chid), jnp.float32) * 0.2,
        dw1_b=jax.random.normal(k[4], (Chid,), jnp.float32) * 0.1,
        bn1_g=1.0 + 0.2 * jax.random.normal(k[5], (Chid,), jnp.float32),
        bn1_b=0.2 * jax.random.normal(k[6], (Chid,), jnp.float32),
        w2=jax.random.normal(k[7], (Chid, Cout), jnp.float32) * 0.1,
        b2=jax.random.normal(k[8], (Cout,), jnp.float32) * 0.1,
        dw2_w=jax.random.normal(k[9], (3, 3, Cout), jnp.float32) * 0.2,
        dw2_b=jax.random.normal(k[10], (Cout,), jnp.float32) * 0.1,
        bn2_g=1.0 + 0.2 * jax.random.normal(k[11], (Cout,), jnp.float32),
        bn2_b=0.2 * jax.random.normal(k[12], (Cout,), jnp.float32),
    )

    # --- fused (fc1 + DW + BN + ReLU) block alone ------------------------------
    want = ref_block(x, H, W, params["w1"], params["b1"], params["dw1_w"],
                     params["dw1_b"], params["bn1_g"], params["bn1_b"])
    # default batch tiling -> nb=2 (exercises the shifted-variance accumulation)
    got = jax.block_until_ready(kan_block(
        x, H, W, params["w1"], params["b1"], params["dw1_w"], params["dw1_b"],
        params["bn1_g"], params["bn1_b"]))
    assert got.shape == (B, N, Chid)
    assert jnp.allclose(got, want, atol=2e-3, rtol=2e-3), (
        f"block max err {float(jnp.max(jnp.abs(got - want)))}")
    # whole-batch tiling -> nb=1 (exactly-centered variance path)
    got1 = jax.block_until_ready(kan_block(
        x, H, W, params["w1"], params["b1"], params["dw1_w"], params["dw1_b"],
        params["bn1_g"], params["bn1_b"], batch_tile=B))
    assert jnp.allclose(got1, want, atol=2e-3, rtol=2e-3), (
        f"block (bt=B) max err {float(jnp.max(jnp.abs(got1 - want)))}")

    # --- full KANLayer forward (2 fused pallas_calls) --------------------------
    out = jax.block_until_ready(kan_layer_forward(x, H, W, params))
    ref = ref_kan_layer(x, H, W, params)
    assert out.shape == (B, N, Cout)
    assert out.dtype == jnp.float32
    assert jnp.allclose(out, ref, atol=1e-2, rtol=1e-2), (
        f"end-to-end max err {float(jnp.max(jnp.abs(out - ref)))}")

    print("KERNEL_OK")
</pallas_src>

<mosaic_0001>
module attributes {stable_mosaic.version = 11 : i64} {
  func.func @_fused_block_kernel(%arg0: i32, %arg1: i32, %arg2: i32, %arg3: memref<1x64x32xf32, #tpu.memory_space<vmem>>, %arg4: memref<32x64xf32, #tpu.memory_space<vmem>>, %arg5: memref<1x64xf32, #tpu.memory_space<vmem>>, %arg6: memref<3x3x64xf32, #tpu.memory_space<vmem>>, %arg7: memref<1x64xf32, #tpu.memory_space<vmem>>, %arg8: memref<1x64xf32, #tpu.memory_space<vmem>>, %arg9: memref<1x64xf32, #tpu.memory_space<vmem>>, %arg10: memref<1x64x64xf32, #tpu.memory_space<vmem>>, %arg11: memref<1x10x10x64xf32, #tpu.memory_space<vmem>>, %arg12: memref<2x64x64xf32, #tpu.memory_space<vmem>>, %arg13: memref<1x64xf32, #tpu.memory_space<vmem>>, %arg14: memref<1x64xf32, #tpu.memory_space<vmem>>, %arg15: memref<1x64xf32, #tpu.memory_space<vmem>>, %arg16: memref<1x64xf32, #tpu.memory_space<vmem>>, %arg17: memref<1x64xf32, #tpu.memory_space<vmem>>) attributes {dimension_semantics = [#tpu.dimension_semantics<parallel>, #tpu.dimension_semantics<arbitrary>, #tpu.dimension_semantics<arbitrary>], iteration_bounds = array<i64: 1, 2, 2>, scalar_prefetch = 0 : i64, scratch_operands = 7 : i64, tpu.core_type = #tpu.core_type<tc>, window_params = [{transform_indices = @transform_0, window_bounds = array<i64: 1, 64, 32>}, {transform_indices = @transform_1, window_bounds = array<i64: 32, 64>}, {transform_indices = @transform_2, window_bounds = array<i64: 1, 64>}, {transform_indices = @transform_3, window_bounds = array<i64: 3, 3, 64>}, {transform_indices = @transform_4, window_bounds = array<i64: 1, 64>}, {transform_indices = @transform_5, window_bounds = array<i64: 1, 64>}, {transform_indices = @transform_6, window_bounds = array<i64: 1, 64>}, {transform_indices = @transform_7, window_bounds = array<i64: 1, 64, 64>}]} {
    %c1_i32 = arith.constant 1 : i32
    %0 = arith.muli %arg2, %c1_i32 : i32
    %1 = tpu.assume_multiple %0, 1 : i32
    %c0_i32 = arith.constant 0 : i32
    %2 = arith.cmpi eq, %arg1, %c0_i32 : i32
    %3 = arith.extui %2 : i1 to i32
    %c0_i32_0 = arith.constant 0 : i32
    %4 = arith.cmpi ne, %3, %c0_i32_0 : i32
    scf.if %4 {
      %c0_i32_3 = arith.constant 0 : i32
      %8 = arith.cmpi eq, %arg2, %c0_i32_3 : i32
      %9 = arith.extui %8 : i1 to i32
      %c0_i32_4 = arith.constant 0 : i32
      %10 = arith.cmpi ne, %9, %c0_i32_4 : i32
      scf.if %10 {
        %cst_99 = arith.constant 0.000000e+00 : f32
        %120 = vector.broadcast %cst_99 : f32 to vector<1x10x10x64xf32>
        %c0_100 = arith.constant 0 : index
        %c0_101 = arith.constant 0 : index
        %c0_102 = arith.constant 0 : index
        %c0_103 = arith.constant 0 : index
        %121 = vector.load %arg11[%c0_100, %c0_101, %c0_102, %c0_103] : memref<1x10x10x64xf32, #tpu.memory_space<vmem>>, vector<1x10x10x64xf32>
        tpu.vector_store %arg11[%c0_100, %c0_101, %c0_102, %c0_103], %120 {strides = array<i32>} : memref<1x10x10x64xf32, #tpu.memory_space<vmem>>, vector<1x10x10x64xf32>,
        %cst_104 = arith.constant 0.000000e+00 : f32
        %122 = vector.broadcast %cst_104 : f32 to vector<1x64xf32>
        %c0_105 = arith.constant 0 : index
        %c0_106 = arith.constant 0 : index
        %123 = vector.load %arg13[%c0_105, %c0_106] : memref<1x64xf32, #tpu.memory_space<vmem>>, vector<1x64xf32>
        tpu.vector_store %arg13[%c0_105, %c0_106], %122 {strides = array<i32>} : memref<1x64xf32, #tpu.memory_space<vmem>>, vector<1x64xf32>,
        %cst_107 = arith.constant 0.000000e+00 : f32
        %124 = vector.broadcast %cst_107 : f32 to vector<1x64xf32>
        %c0_108 = arith.constant 0 : index
        %c0_109 = arith.constant 0 : index
        %125 = vector.load %arg14[%c0_108, %c0_109] : memref<1x64xf32, #tpu.memory_space<vmem>>, vector<1x64xf32>
        tpu.vector_store %arg14[%c0_108, %c0_109], %124 {strides = array<i32>} : memref<1x64xf32, #tpu.memory_space<vmem>>, vector<1x64xf32>,
      } else {
      }
      %c0 = arith.constant 0 : index
      %c0_5 = arith.constant 0 : index
      %c0_6 = arith.constant 0 : index
      %11 = vector.load %arg3[%c0, %c0_5, %c0_6] : memref<1x64x32xf32, #tpu.memory_space<vmem>>, vector<1x64x32xf32>
      %12 = vector.shape_cast %11 : vector<1x64x32xf32> to vector<64x32xf32>
      %13 = arith.truncf %12 : vector<64x32xf32> to vector<64x32xbf16>
      %c0_7 = arith.constant 0 : index
      %c0_8 = arith.constant 0 : index
      %14 = vector.load %arg4[%c0_7, %c0_8] : memref<32x64xf32, #tpu.memory_space<vmem>>, vector<32x64xf32>
      %15 = arith.truncf %14 : vector<32x64xf32> to vector<32x64xbf16>
      %cst = arith.constant dense<0.000000e+00> : vector<64x64xf32>
      %16 = tpu.matmul %13, %15, %cst {dimension_numbers = #tpu.dot_dimension_numbers<[1], [0], [0], [1], [0, 0, 1, 1], [], []>} : vector<64x32xbf16>, vector<32x64xbf16>, vector<64x64xf32> -> vector<64x64xf32>
      %c0_9 = arith.constant 0 : index
      %c0_10 = arith.constant 0 : index
      %17 = vector.load %arg5[%c0_9, %c0_10] : memref<1x64xf32, #tpu.memory_space<vmem>>, vector<1x64xf32>
      %18 = vector.shape_cast %17 : vector<1x64xf32> to vector<64xf32>
      %19 = vector.shape_cast %18 : vector<64xf32> to vector<1x64xf32>
      %20 = vector.broadcast %19 : vector<1x64xf32> to vector<64x64xf32>
      %21 = arith.addf %16, %20 : vector<64x64xf32>
      %22 = vector.shape_cast %21 : vector<64x64xf32> to vector<1x8x8x64xf32>
      %c0_11 = arith.constant 0 : index
      %c1 = arith.constant 1 : index
      %c1_12 = arith.constant 1 : index
      %c0_13 = arith.constant 0 : index
      %23 = vector.load %arg11[%c0_11, %c1, %c1_12, %c0_13] : memref<1x10x10x64xf32, #tpu.memory_space<vmem>>, vector<1x8x8x64xf32>
      tpu.vector_store %arg11[%c0_11, %c1, %c1_12, %c0_13], %22 {strides = array<i32>} : memref<1x10x10x64xf32, #tpu.memory_space<vmem>>, vector<1x8x8x64xf32>,
      %cst_14 = arith.constant 0.000000e+00 : f32
      %24 = vector.broadcast %cst_14 : f32 to vector<1x8x8x64xf32>
      %c0_15 = arith.constant 0 : index
      %c0_16 = arith.constant 0 : index
      %c0_17 = arith.constant 0 : index
      %c0_18 = arith.constant 0 : index
      %25 = vector.load %arg11[%c0_15, %c0_16, %c0_17, %c0_18] : memref<1x10x10x64xf32, #tpu.memory_space<vmem>>, vector<1x8x8x64xf32>
      %c0_19 = arith.constant 0 : index
      %c0_20 = arith.constant 0 : index
      %c0_21 = arith.constant 0 : index
      %26 = vector.load %arg6[%c0_19, %c0_20, %c0_21] : memref<3x3x64xf32, #tpu.memory_space<vmem>>, vector<1x1x64xf32>
      %27 = vector.shape_cast %26 : vector<1x1x64xf32> to vector<64xf32>
      %28 = vector.shape_cast %27 : vector<64xf32> to vector<1x1x1x64xf32>
      %29 = vector.broadcast %28 : vector<1x1x1x64xf32> to vector<1x8x8x64xf32>
      %30 = arith.mulf %25, %29 : vector<1x8x8x64xf32>
      %31 = arith.addf %24, %30 : vector<1x8x8x64xf32>
      %c0_22 = arith.constant 0 : index
      %c0_23 = arith.constant 0 : index
      %c1_24 = arith.constant 1 : index
      %c0_25 = arith.constant 0 : index
      %32 = vector.load %arg11[%c0_22, %c0_23, %c1_24, %c0_25] : memref<1x10x10x64xf32, #tpu.memory_space<vmem>>, vector<1x8x8x64xf32>
      %c0_26 = arith.constant 0 : index
      %c1_27 = arith.constant 1 : index
      %c0_28 = arith.constant 0 : index
      %33 = vector.load %arg6[%c0_26, %c1_27, %c0_28] : memref<3x3x64xf32, #tpu.memory_space<vmem>>, vector<1x1x64xf32>
      %34 = vector.shape_cast %33 : vector<1x1x64xf32> to vector<64xf32>
      %35 = vector.shape_cast %34 : vector<64xf32> to vector<1x1x1x64xf32>
      %36 = vector.broadcast %35 : vector<1x1x1x64xf32> to vector<1x8x8x64xf32>
      %37 = arith.mulf %32, %36 : vector<1x8x8x64xf32>
      %38 = arith.addf %31, %37 : vector<1x8x8x64xf32>
      %c0_29 = arith.constant 0 : index
      %c0_30 = arith.constant 0 : index
      %c2 = arith.constant 2 : index
      %c0_31 = arith.constant 0 : index
      %39 = vector.load %arg11[%c0_29, %c0_30, %c2, %c0_31] : memref<1x10x10x64xf32, #tpu.memory_space<vmem>>, vector<1x8x8x64xf32>
      %c0_32 = arith.constant 0 : index
      %c2_33 = arith.constant 2 : index
      %c0_34 = arith.constant 0 : index
      %40 = vector.load %arg6[%c0_32, %c2_33, %c0_34] : memref<3x3x64xf32, #tpu.memory_space<vmem>>, vector<1x1x64xf32>
      %41 = vector.shape_cast %40 : vector<1x1x64xf32> to vector<64xf32>
      %42 = vector.shape_cast %41 : vector<64xf32> to vector<1x1x1x64xf32>
      %43 = vector.broadcast %42 : vector<1x1x1x64xf32> to vector<1x8x8x64xf32>
      %44 = arith.mulf %39, %43 : vector<1x8x8x64xf32>
      %45 = arith.addf %38, %44 : vector<1x8x8x64xf32>
      %c0_35 = arith.constant 0 : index
      %c1_36 = arith.constant 1 : index
      %c0_37 = arith.constant 0 : index
      %c0_38 = arith.constant 0 : index
      %46 = vector.load %arg11[%c0_35, %c1_36, %c0_37, %c0_38] : memref<1x10x10x64xf32, #tpu.memory_space<vmem>>, vector<1x8x8x64xf32>
      %c1_39 = arith.constant 1 : index
      %c0_40 = arith.constant 0 : index
      %c0_41 = arith.constant 0 : index
      %47 = vector.load %arg6[%c1_39, %c0_40, %c0_41] : memref<3x3x64xf32, #tpu.memory_space<vmem>>, vector<1x1x64xf32>
      %48 = vector.shape_cast %47 : vector<1x1x64xf32> to vector<64xf32>
      %49 = vector.shape_cast %48 : vector<64xf32> to vector<1x1x1x64xf32>
      %50 = vector.broadcast %49 : vector<1x1x1x64xf32> to vector<1x8x8x64xf32>
      %51 = arith.mulf %46, %50 : vector<1x8x8x64xf32>
      %52 = arith.addf %45, %51 : vector<1x8x8x64xf32>
      %c0_42 = arith.constant 0 : index
      %c1_43 = arith.constant 1 : index
      %c1_44 = arith.constant 1 : index
      %c0_45 = arith.constant 0 : index
      %53 = vector.load %arg11[%c0_42, %c1_43, %c1_44, %c0_45] : memref<1x10x10x64xf32, #tpu.memory_space<vmem>>, vector<1x8x8x64xf32>
      %c1_46 = arith.constant 1 : index
      %c1_47 = arith.constant 1 : index
      %c0_48 = arith.constant 0 : index
      %54 = vector.load %arg6[%c1_46, %c1_47, %c0_48] : memref<3x3x64xf32, #tpu.memory_space<vmem>>, vector<1x1x64xf32>
      %55 = vector.shape_cast %54 : vector<1x1x64xf32> to vector<64xf32>
      %56 = vector.shape_cast %55 : vector<64xf32> to vector<1x1x1x64xf32>
      %57 = vector.broadcast %56 : vector<1x1x1x64xf32> to vector<1x8x8x64xf32>
      %58 = arith.mulf %53, %57 : vector<1x8x8x64xf32>
      %59 = arith.addf %52, %58 : vector<1x8x8x64xf32>
      %c0_49 = arith.constant 0 : index
      %c1_50 = arith.constant 1 : index
      %c2_51 = arith.constant 2 : index
      %c0_52 = arith.constant 0 : index
      %60 = vector.load %arg11[%c0_49, %c1_50, %c2_51, %c0_52] : memref<1x10x10x64xf32, #tpu.memory_space<vmem>>, vector<1x8x8x64xf32>
      %c1_53 = arith.constant 1 : index
      %c2_54 = arith.constant 2 : index
      %c0_55 = arith.constant 0 : index
      %61 = vector.load %arg6[%c1_53, %c2_54, %c0_55] : memref<3x3x64xf32, #tpu.memory_space<vmem>>, vector<1x1x64xf32>
      %62 = vector.shape_cast %61 : vector<1x1x64xf32> to vector<64xf32>
      %63 = vector.shape_cast %62 : vector<64xf32> to vector<1x1x1x64xf32>
      %64 = vector.broadcast %63 : vector<1x1x1x64xf32> to vector<1x8x8x64xf32>
      %65 = arith.mulf %60, %64 : vector<1x8x8x64xf32>
      %66 = arith.addf %59, %65 : vector<1x8x8x64xf32>
      %c0_56 = arith.constant 0 : index
      %c2_57 = arith.constant 2 : index
      %c0_58 = arith.constant 0 : index
      %c0_59 = arith.constant 0 : index
      %67 = vector.load %arg11[%c0_56, %c2_57, %c0_58, %c0_59] : memref<1x10x10x64xf32, #tpu.memory_space<vmem>>, vector<1x8x8x64xf32>
      %c2_60 = arith.constant 2 : index
      %c0_61 = arith.constant 0 : index
      %c0_62 = arith.constant 0 : index
      %68 = vector.load %arg6[%c2_60, %c0_61, %c0_62] : memref<3x3x64xf32, #tpu.memory_space<vmem>>, vector<1x1x64xf32>
      %69 = vector.shape_cast %68 : vector<1x1x64xf32> to vector<64xf32>
      %70 = vector.shape_cast %69 : vector<64xf32> to vector<1x1x1x64xf32>
      %71 = vector.broadcast %70 : vector<1x1x1x64xf32> to vector<1x8x8x64xf32>
      %72 = arith.mulf %67, %71 : vector<1x8x8x64xf32>
      %73 = arith.addf %66, %72 : vector<1x8x8x64xf32>
      %c0_63 = arith.constant 0 : index
      %c2_64 = arith.constant 2 : index
      %c1_65 = arith.constant 1 : index
      %c0_66 = arith.constant 0 : index
      %74 = vector.load %arg11[%c0_63, %c2_64, %c1_65, %c0_66] : memref<1x10x10x64xf32, #tpu.memory_space<vmem>>, vector<1x8x8x64xf32>
      %c2_67 = arith.constant 2 : index
      %c1_68 = arith.constant 1 : index
      %c0_69 = arith.constant 0 : index
      %75 = vector.load %arg6[%c2_67, %c1_68, %c0_69] : memref<3x3x64xf32, #tpu.memory_space<vmem>>, vector<1x1x64xf32>
      %76 = vector.shape_cast %75 : vector<1x1x64xf32> to vector<64xf32>
      %77 = vector.shape_cast %76 : vector<64xf32> to vector<1x1x1x64xf32>
      %78 = vector.broadcast %77 : vector<1x1x1x64xf32> to vector<1x8x8x64xf32>
      %79 = arith.mulf %74, %78 : vector<1x8x8x64xf32>
      %80 = arith.addf %73, %79 : vector<1x8x8x64xf32>
      %c0_70 = arith.constant 0 : index
      %c2_71 = arith.constant 2 : index
      %c2_72 = arith.constant 2 : index
      %c0_73 = arith.constant 0 : index
      %81 = vector.load %arg11[%c0_70, %c2_71, %c2_72, %c0_73] : memref<1x10x10x64xf32, #tpu.memory_space<vmem>>, vector<1x8x8x64xf32>
      %c2_74 = arith.constant 2 : index
      %c2_75 = arith.constant 2 : index
      %c0_76 = arith.constant 0 : index
      %82 = vector.load %arg6[%c2_74, %c2_75, %c0_76] : memref<3x3x64xf32, #tpu.memory_space<vmem>>, vector<1x1x64xf32>
      %83 = vector.shape_cast %82 : vector<1x1x64xf32> to vector<64xf32>
      %84 = vector.shape_cast %83 : vector<64xf32> to vector<1x1x1x64xf32>
      %85 = vector.broadcast %84 : vector<1x1x1x64xf32> to vector<1x8x8x64xf32>
      %86 = arith.mulf %81, %85 : vector<1x8x8x64xf32>
      %87 = arith.addf %80, %86 : vector<1x8x8x64xf32>
      %c0_77 = arith.constant 0 : index
      %c0_78 = arith.constant 0 : index
      %88 = vector.load %arg7[%c0_77, %c0_78] : memref<1x64xf32, #tpu.memory_space<vmem>>, vector<1x64xf32>
      %89 = vector.shape_cast %88 : vector<1x64xf32> to vector<64xf32>
      %90 = vector.shape_cast %89 : vector<64xf32> to vector<1x1x1x64xf32>
      %91 = vector.broadcast %90 : vector<1x1x1x64xf32> to vector<1x8x8x64xf32>
      %92 = arith.addf %87, %91 : vector<1x8x8x64xf32>
      %93 = vector.shape_cast %92 : vector<1x8x8x64xf32> to vector<1x64x64xf32>
      %94 = arith.index_cast %1 : i32 to index
      %c0_79 = arith.constant 0 : index
      %c0_80 = arith.constant 0 : index
      %95 = vector.load %arg12[%94, %c0_79, %c0_80] : memref<2x64x64xf32, #tpu.memory_space<vmem>>, vector<1x64x64xf32>
      tpu.vector_store %arg12[%94, %c0_79, %c0_80], %93 {strides = array<i32>} : memref<2x64x64xf32, #tpu.memory_space<vmem>>, vector<1x64x64xf32>,
      %c0_i32_81 = arith.constant 0 : i32
      %96 = arith.cmpi eq, %arg2, %c0_i32_81 : i32
      %97 = arith.extui %96 : i1 to i32
      %c0_i32_82 = arith.constant 0 : i32
      %98 = arith.cmpi ne, %97, %c0_i32_82 : i32
      scf.if %98 {
        %cst_99 = arith.constant dense<0.000000e+00> : vector<64x64xf32>
        %120 = vector.multi_reduction <add>, %93, %cst_99 [0] : vector<1x64x64xf32> to vector<64x64xf32>
        %cst_100 = arith.constant dense<0.000000e+00> : vector<64xf32>
        %121 = vector.multi_reduction <add>, %120, %cst_100 [0] : vector<64x64xf32> to vector<64xf32>
        %122 = vector.shape_cast %121 : vector<64xf32> to vector<1x64xf32>
        %cst_101 = arith.constant 1.562500e-02 : f32
        %123 = vector.broadcast %cst_101 : f32 to vector<1x64xf32>
        %124 = arith.mulf %122, %123 : vector<1x64xf32>
        %c0_102 = arith.constant 0 : index
        %c0_103 = arith.constant 0 : index
        %125 = vector.load %arg15[%c0_102, %c0_103] : memref<1x64xf32, #tpu.memory_space<vmem>>, vector<1x64xf32>
        tpu.vector_store %arg15[%c0_102, %c0_103], %124 {strides = array<i32>} : memref<1x64xf32, #tpu.memory_space<vmem>>, vector<1x64xf32>,
      } else {
      }
      %c0_83 = arith.constant 0 : index
      %c0_84 = arith.constant 0 : index
      %99 = vector.load %arg15[%c0_83, %c0_84] : memref<1x64xf32, #tpu.memory_space<vmem>>, vector<1x64xf32>
      %100 = vector.shape_cast %99 : vector<1x64xf32> to vector<64xf32>
      %101 = vector.shape_cast %100 : vector<64xf32> to vector<1x1x64xf32>
      %102 = vector.broadcast %101 : vector<1x1x64xf32> to vector<1x64x64xf32>
      %103 = arith.subf %93, %102 : vector<1x64x64xf32>
      %c0_85 = arith.constant 0 : index
      %c0_86 = arith.constant 0 : index
      %104 = vector.load %arg13[%c0_85, %c0_86] : memref<1x64xf32, #tpu.memory_space<vmem>>, vector<1x64xf32>
      %cst_87 = arith.constant dense<0.000000e+00> : vector<64x64xf32>
      %105 = vector.multi_reduction <add>, %103, %cst_87 [0] : vector<1x64x64xf32> to vector<64x64xf32>
      %cst_88 = arith.constant dense<0.000000e+00> : vector<64xf32>
      %106 = vector.multi_reduction <add>, %105, %cst_88 [0] : vector<64x64xf32> to vector<64xf32>
      %107 = vector.shape_cast %106 : vector<64xf32> to vector<1x64xf32>
      %108 = arith.addf %104, %107 : vector<1x64xf32>
      %c0_89 = arith.constant 0 : index
      %c0_90 = arith.constant 0 : index
      %109 = vector.load %arg13[%c0_89, %c0_90] : memref<1x64xf32, #tpu.memory_space<vmem>>, vector<1x64xf32>
      tpu.vector_store %arg13[%c0_89, %c0_90], %108 {strides = array<i32>} : memref<1x64xf32, #tpu.memory_space<vmem>>, vector<1x64xf32>,
      %c0_91 = arith.constant 0 : index
      %c0_92 = arith.constant 0 : index
      %110 = vector.load %arg14[%c0_91, %c0_92] : memref<1x64xf32, #tpu.memory_space<vmem>>, vector<1x64xf32>
      %111 = arith.mulf %103, %103 : vector<1x64x64xf32>
      %cst_93 = arith.constant dense<0.000000e+00> : vector<64x64xf32>
      %112 = vector.multi_reduction <add>, %111, %cst_93 [0] : vector<1x64x64xf32> to vector<64x64xf32>
      %cst_94 = arith.constant dense<0.000000e+00> : vector<64xf32>
      %113 = vector.multi_reduction <add>, %112, %cst_94 [0] : vector<64x64xf32> to vector<64xf32>
      %114 = vector.shape_cast %113 : vector<64xf32> to vector<1x64xf32>
      %115 = arith.addf %110, %114 : vector<1x64xf32>
      %c0_95 = arith.constant 0 : index
      %c0_96 = arith.constant 0 : index
      %116 = vector.load %arg14[%c0_95, %c0_96] : memref<1x64xf32, #tpu.memory_space<vmem>>, vector<1x64xf32>
      tpu.vector_store %arg14[%c0_95, %c0_96], %115 {strides = array<i32>} : memref<1x64xf32, #tpu.memory_space<vmem>>, vector<1x64xf32>,
      %c1_i32_97 = arith.constant 1 : i32
      %117 = arith.cmpi eq, %arg2, %c1_i32_97 : i32
      %118 = arith.extui %117 : i1 to i32
      %c0_i32_98 = arith.constant 0 : i32
      %119 = arith.cmpi ne, %118, %c0_i32_98 : i32
      scf.if %119 {
        %c0_99 = arith.constant 0 : index
        %c0_100 = arith.constant 0 : index
        %120 = vector.load %arg13[%c0_99, %c0_100] : memref<1x64xf32, #tpu.memory_space<vmem>>, vector<1x64xf32>
        %cst_101 = arith.constant 7.812500e-03 : f32
        %121 = vector.broadcast %cst_101 : f32 to vector<1x64xf32>
        %122 = arith.mulf %120, %121 : vector<1x64xf32>
        %c0_102 = arith.constant 0 : index
        %c0_103 = arith.constant 0 : index
        %123 = vector.load %arg14[%c0_102, %c0_103] : memref<1x64xf32, #tpu.memory_space<vmem>>, vector<1x64xf32>
        %cst_104 = arith.constant 7.812500e-03 : f32
        %124 = vector.broadcast %cst_104 : f32 to vector<1x64xf32>
        %125 = arith.mulf %123, %124 : vector<1x64xf32>
        %126 = arith.mulf %122, %122 : vector<1x64xf32>
        %127 = arith.subf %125, %126 : vector<1x64xf32>
        %c0_105 = arith.constant 0 : index
        %c0_106 = arith.constant 0 : index
        %128 = vector.load %arg15[%c0_105, %c0_106] : memref<1x64xf32, #tpu.memory_space<vmem>>, vector<1x64xf32>
        %129 = arith.addf %122, %128 : vector<1x64xf32>
        %c0_107 = arith.constant 0 : index
        %c0_108 = arith.constant 0 : index
        %130 = vector.load %arg8[%c0_107, %c0_108] : memref<1x64xf32, #tpu.memory_space<vmem>>, vector<1x64xf32>
        %cst_109 = arith.constant 9.99999974E-6 : f32
        %131 = vector.broadcast %cst_109 : f32 to vector<1x64xf32>
        %132 = arith.addf %127, %131 : vector<1x64xf32>
        %133 = math.rsqrt %132 : vector<1x64xf32>
        %134 = arith.mulf %130, %133 : vector<1x64xf32>
        %c0_110 = arith.constant 0 : index
        %c0_111 = arith.constant 0 : index
        %135 = vector.load %arg16[%c0_110, %c0_111] : memref<1x64xf32, #tpu.memory_space<vmem>>, vector<1x64xf32>
        tpu.vector_store %arg16[%c0_110, %c0_111], %134 {strides = array<i32>} : memref<1x64xf32, #tpu.memory_space<vmem>>, vector<1x64xf32>,
        %c0_112 = arith.constant 0 : index
        %c0_113 = arith.constant 0 : index
        %136 = vector.load %arg9[%c0_112, %c0_113] : memref<1x64xf32, #tpu.memory_space<vmem>>, vector<1x64xf32>
        %137 = arith.mulf %129, %134 : vector<1x64xf32>
        %138 = arith.subf %136, %137 : vector<1x64xf32>
        %c0_114 = arith.constant 0 : index
        %c0_115 = arith.constant 0 : index
        %139 = vector.load %arg17[%c0_114, %c0_115] : memref<1x64xf32, #tpu.memory_space<vmem>>, vector<1x64xf32>
        tpu.vector_store %arg17[%c0_114, %c0_115], %138 {strides = array<i32>} : memref<1x64xf32, #tpu.memory_space<vmem>>, vector<1x64xf32>,
      } else {
      }
    } else {
    }
    %c1_i32_1 = arith.constant 1 : i32
    %5 = arith.cmpi eq, %arg1, %c1_i32_1 : i32
    %6 = arith.extui %5 : i1 to i32
    %c0_i32_2 = arith.constant 0 : i32
    %7 = arith.cmpi ne, %6, %c0_i32_2 : i32
    scf.if %7 {
      %8 = arith.index_cast %1 : i32 to index
      %c0 = arith.constant 0 : index
      %c0_3 = arith.constant 0 : index
      %9 = vector.load %arg12[%8, %c0, %c0_3] : memref<2x64x64xf32, #tpu.memory_space<vmem>>, vector<1x64x64xf32>
      %c0_4 = arith.constant 0 : index
      %c0_5 = arith.constant 0 : index
      %10 = vector.load %arg16[%c0_4, %c0_5] : memref<1x64xf32, #tpu.memory_space<vmem>>, vector<1x64xf32>
      %11 = vector.shape_cast %10 : vector<1x64xf32> to vector<64xf32>
      %12 = vector.shape_cast %11 : vector<64xf32> to vector<1x1x64xf32>
      %13 = vector.broadcast %12 : vector<1x1x64xf32> to vector<1x64x64xf32>
      %14 = arith.mulf %9, %13 : vector<1x64x64xf32>
      %c0_6 = arith.constant 0 : index
      %c0_7 = arith.constant 0 : index
      %15 = vector.load %arg17[%c0_6, %c0_7] : memref<1x64xf32, #tpu.memory_space<vmem>>, vector<1x64xf32>
      %16 = vector.shape_cast %15 : vector<1x64xf32> to vector<64xf32>
      %17 = vector.shape_cast %16 : vector<64xf32> to vector<1x1x64xf32>
      %18 = vector.broadcast %17 : vector<1x1x64xf32> to vector<1x64x64xf32>
      %19 = arith.addf %14, %18 : vector<1x64x64xf32>
      %cst = arith.constant 0.000000e+00 : f32
      %20 = vector.broadcast %cst : f32 to vector<1x64x64xf32>
      %21 = arith.maximumf %19, %20 : vector<1x64x64xf32>
      %c0_8 = arith.constant 0 : index
      %c0_9 = arith.constant 0 : index
      %c0_10 = arith.constant 0 : index
      %22 = vector.load %arg10[%c0_8, %c0_9, %c0_10] : memref<1x64x64xf32, #tpu.memory_space<vmem>>, vector<1x64x64xf32>
      tpu.vector_store %arg10[%c0_8, %c0_9, %c0_10], %21 {strides = array<i32>} : memref<1x64x64xf32, #tpu.memory_space<vmem>>, vector<1x64x64xf32>,
    } else {
    }
    return
  }
  func.func @transform_0(%arg0: i32, %arg1: i32, %arg2: i32) -> (i32, i32, i32) {
    %c0_i32 = arith.constant 0 : i32
    %0 = arith.cmpi eq, %arg1, %c0_i32 : i32
    %c1_i32 = arith.constant 1 : i32
    %1 = arith.select %0, %arg2, %c1_i32 : i32
    %c0_i32_0 = arith.constant 0 : i32
    %c0_i32_1 = arith.constant 0 : i32
    %c0_i32_2 = arith.constant 0 : i32
    return %1, %c0_i32_0, %c0_i32_1 : i32, i32, i32
  }
  func.func @transform_1(%arg0: i32, %arg1: i32, %arg2: i32) -> (i32, i32) {
    %c0_i32 = arith.constant 0 : i32
    %c0_i32_0 = arith.constant 0 : i32
    return %c0_i32, %arg0 : i32, i32
  }
  func.func @transform_2(%arg0: i32, %arg1: i32, %arg2: i32) -> (i32, i32) {
    %c0_i32 = arith.constant 0 : i32
    %c0_i32_0 = arith.constant 0 : i32
    return %c0_i32, %arg0 : i32, i32
  }
  func.func @transform_3(%arg0: i32, %arg1: i32, %arg2: i32) -> (i32, i32, i32) {
    %c0_i32 = arith.constant 0 : i32
    %c0_i32_0 = arith.constant 0 : i32
    %c0_i32_1 = arith.constant 0 : i32
    return %c0_i32, %c0_i32_0, %arg0 : i32, i32, i32
  }
  func.func @transform_4(%arg0: i32, %arg1: i32, %arg2: i32) -> (i32, i32) {
    %c0_i32 = arith.constant 0 : i32
    %c0_i32_0 = arith.constant 0 : i32
    return %c0_i32, %arg0 : i32, i32
  }
  func.func @transform_5(%arg0: i32, %arg1: i32, %arg2: i32) -> (i32, i32) {
    %c0_i32 = arith.constant 0 : i32
    %c0_i32_0 = arith.constant 0 : i32
    return %c0_i32, %arg0 : i32, i32
  }
  func.func @transform_6(%arg0: i32, %arg1: i32, %arg2: i32) -> (i32, i32) {
    %c0_i32 = arith.constant 0 : i32
    %c0_i32_0 = arith.constant 0 : i32
    return %c0_i32, %arg0 : i32, i32
  }
  func.func @transform_7(%arg0: i32, %arg1: i32, %arg2: i32) -> (i32, i32, i32) {
    %c1_i32 = arith.constant 1 : i32
    %0 = arith.cmpi eq, %arg1, %c1_i32 : i32
    %c0_i32 = arith.constant 0 : i32
    %1 = arith.select %0, %arg2, %c0_i32 : i32
    %c0_i32_0 = arith.constant 0 : i32
    %c0_i32_1 = arith.constant 0 : i32
    return %1, %c0_i32_0, %arg0 : i32, i32, i32
  }
}

</mosaic_0001>

<llo_original>
// kernel: tpu_custom_call.1
$region0: #{tpu_custom_call.1}
  #allocation0 [shape = 'u32[]', space=smem, size = 0x4, offset = 0x4, fixed_abs, tag = 'smem constant byte address 0x4 - core index']
  #allocation1 [shape = 'u32[72,128]{1,0:T(1,128)}', space=vmem, size = 0x9000, scoped, tag = 'internal scratch']
  #allocation2 [shape = 'f32[1,10,10,64]{3,2,1,0:T(8,128)}', space=vmem, size = 0x14000, scoped, tag = 'scratch operand']
  #allocation3 [shape = 'f32[2,64,64]{2,1,0:T(8,128)}', space=vmem, size = 0x10000, scoped, tag = 'scratch operand']
  #allocation4 [shape = 'f32[1,64]{1,0:T(1,128)}', space=vmem, size = 0x200, scoped, tag = 'scratch operand']
  #allocation5 [shape = 'f32[1,64]{1,0:T(1,128)}', space=vmem, size = 0x200, scoped, tag = 'scratch operand']
  #allocation6 [shape = 'f32[1,64]{1,0:T(1,128)}', space=vmem, size = 0x200, scoped, tag = 'scratch operand']
  #allocation7 [shape = 'f32[1,64]{1,0:T(1,128)}', space=vmem, size = 0x200, scoped, tag = 'scratch operand']
  #allocation8 [shape = 'f32[1,64]{1,0:T(1,128)}', space=vmem, size = 0x200, scoped, tag = 'scratch operand']
  %s0 = inlined_call_operand.vmem [shape: f32[2,64,32], index: 0, kind: input, shape index: {}]
  %s1 = inlined_call_operand.vmem [shape: f32[32,64], index: 1, kind: input, shape index: {}]
  %s2 = inlined_call_operand.vmem [shape: f32[1,64], index: 2, kind: input, shape index: {}]
  %s3 = inlined_call_operand.vmem [shape: f32[3,3,64], index: 3, kind: input, shape index: {}]
  %s4 = inlined_call_operand.vmem [shape: f32[1,64], index: 4, kind: input, shape index: {}]
  %s5 = inlined_call_operand.vmem [shape: f32[1,64], index: 5, kind: input, shape index: {}]
  %s6 = inlined_call_operand.vmem [shape: f32[1,64], index: 6, kind: input, shape index: {}]
  %s7 = inlined_call_operand.hbm [shape: f32[2,64,64], index: 7, kind: output, shape index: {}]
  %s8 = sld [smem:[#allocation0]]
  $region81: #{tpu_custom_call.1} parent=0
    _
  %s10 = ssub.s32 1, %s8
  %s11 = scalar_select 0, %s10, %s8
  $region1: #{tpu_custom_call.1} parent=0
    #allocation9 [shape = 'u8[65536]{0}', space=vmem, size = 0x10000, scoped, tag = 'output window, operand 0']
    #allocation10 [shape = 's32[2]{0}', space=sflag, size = 0x8, scoped, tag = 'scoped memory for tpu_custom_call.1']
    %12 = vsyncpa [#allocation10], 0
    %s13 = scalar_lea.sflag [#allocation10], 1
    %14 = vsyncpa %s13, 0
    loop: start=0, step=1, limit=6
    $region2: #{tpu_custom_call.1} parent=1 // loop_pre_header
      _
    $region3: #{tpu_custom_call.1} parent=1 // loop_header
      %s16 = sphi 0, %s20
      %p17 = scmp.ge.s32.totalorder %s16, 6
      %s23 = sphi 0, %s42
      %s24 = sphi 0, %s38
      %s25 = sphi 0, %s34
      %s26 = sphi 0, %s23
      %s27 = sphi 0, %s24
      %s28 = sphi 0, %s25
      %s29 = sphi 0, %s26
      %s30 = sphi 0, %s27
      %s31 = sphi 0, %s28
      %s49 = sphi 0, %s51
      %s52 = sphi 0, %s49
      %s53 = sphi 0, %s52
      %s69 = sphi 0, %s53
      %s75 = sphi 0, %s77
      %s78 = sphi 0, %s75
      %s79 = sphi 0, %s78
      %s95 = sphi 0, %s79
      %s101 = sphi 0, %s103
      %s104 = sphi 0, %s101
      %s105 = sphi 0, %s104
      %s121 = sphi 0, %s105
      %s127 = sphi 0, %s129
      %s130 = sphi 0, %s127
      %s131 = sphi 0, %s130
      %s147 = sphi 0, %s131
      %s153 = sphi 0, %s155
      %s156 = sphi 0, %s153
      %s157 = sphi 0, %s156
      %s173 = sphi 0, %s157
      %s179 = sphi 0, %s181
      %s182 = sphi 0, %s179
      %s183 = sphi 0, %s182
      %s199 = sphi 0, %s183
      %s205 = sphi 0, %s207
      %s208 = sphi 0, %s205
      %s209 = sphi 0, %s208
      %s225 = sphi 0, %s209
      %s237 = sphi 0, %s239
      %s240 = sphi 0, %s237
      %s241 = sphi 0, %s240
      %s257 = sphi 0, %s241
    $region4: #{tpu_custom_call.1} parent=1 // loop_header_branch
      %19 = sbr.rel (%p17) target = $region8
    $region5: #{tpu_custom_call.1} parent=1 // loop_body
      %s21 = ssub.s32 %s16, 1
      %s22 = ssub.s32 %s16, 2
      %s32 = sadd.s32 1, %s25
      %p33 = scmp.ge.s32.totalorder %s32, 2
      %s34 = scalar_select %p33, 0, %s32
      %s35 = sadd.s32 1, %s24
      %s36 = scalar_select %p33, %s35, %s24
      %p37 = scmp.ge.s32.totalorder %s36, 2
      %s38 = scalar_select %p37, 0, %s36
      %s39 = sadd.s32 1, %s23
      %s40 = scalar_select %p37, %s39, %s23
      %p41 = scmp.ge.s32.totalorder %s40, 1
      %s42 = scalar_select %p41, 0, %s40
      %p43 = scmp.eq.s32.totalorder %s24, 0
      %s44 = scalar_select %p43, %s25, 1
      %p45 = scmp.eq.s32.totalorder %s38, 0
      %s46 = scalar_select %p45, %s34, 1
      %s47 = ssub.s32 %s44, %s46
      %p48 = scmp.eq.s32.totalorder %s47, 0
      %s50 = sadd.s32 %s49, 1
      %s51 = scalar_select %p48, %s49, %s50
      %p54 = pneg %p48
      %p55 = scmp.eq.s32.totalorder %s16, 3
      %p56 = por %p54, %p55
      %p57 = scmp.ne.s32.totalorder %s49, %s52
      %p58 = scmp.eq.s32.totalorder %s16, 0
      %p59 = por %p57, %p58
      %p60 = scmp.ne.s32.totalorder %s49, %s52
      %p61 = scmp.eq.s32.totalorder %s21, 3
      %p62 = por %p60, %p61
      %p63 = scmp.ne.s32.totalorder %s52, %s53
      %p64 = scmp.eq.s32.totalorder %s21, 0
      %p65 = por %p63, %p64
      %p66 = scmp.ne.s32.totalorder %s52, %s53
      %p67 = scmp.eq.s32.totalorder %s22, 3
      %p68 = por %p66, %p67
      %p70 = scmp.ne.s32.totalorder %s53, %s69
      %p71 = scmp.eq.s32.totalorder %s22, 0
      %p72 = por %p70, %p71
      %s73 = ssub.s32 %s23, %s42
      %p74 = scmp.eq.s32.totalorder %s73, 0
      %s76 = sadd.s32 %s75, 1
      %s77 = scalar_select %p74, %s75, %s76
      %p80 = pneg %p74
      %p81 = scmp.eq.s32.totalorder %s16, 3
      %p82 = por %p80, %p81
      %p83 = scmp.ne.s32.totalorder %s75, %s78
      %p84 = scmp.eq.s32.totalorder %s16, 0
      %p85 = por %p83, %p84
      %p86 = scmp.ne.s32.totalorder %s75, %s78
      %p87 = scmp.eq.s32.totalorder %s21, 3
      %p88 = por %p86, %p87
      %p89 = scmp.ne.s32.totalorder %s78, %s79
      %p90 = scmp.eq.s32.totalorder %s21, 0
      %p91 = por %p89, %p90
      %p92 = scmp.ne.s32.totalorder %s78, %s79
      %p93 = scmp.eq.s32.totalorder %s22, 3
      %p94 = por %p92, %p93
      %p96 = scmp.ne.s32.totalorder %s79, %s95
      %p97 = scmp.eq.s32.totalorder %s22, 0
      %p98 = por %p96, %p97
      %s99 = ssub.s32 %s23, %s42
      %p100 = scmp.eq.s32.totalorder %s99, 0
      %s102 = sadd.s32 %s101, 1
      %s103 = scalar_select %p100, %s101, %s102
      %p106 = pneg %p100
      %p107 = scmp.eq.s32.totalorder %s16, 3
      %p108 = por %p106, %p107
      %p109 = scmp.ne.s32.totalorder %s101, %s104
      %p110 = scmp.eq.s32.totalorder %s16, 0
      %p111 = por %p109, %p110
      %p112 = scmp.ne.s32.totalorder %s101, %s104
      %p113 = scmp.eq.s32.totalorder %s21, 3
      %p114 = por %p112, %p113
      %p115 = scmp.ne.s32.totalorder %s104, %s105
      %p116 = scmp.eq.s32.totalorder %s21, 0
      %p117 = por %p115, %p116
      %p118 = scmp.ne.s32.totalorder %s104, %s105
      %p119 = scmp.eq.s32.totalorder %s22, 3
      %p120 = por %p118, %p119
      %p122 = scmp.ne.s32.totalorder %s105, %s121
      %p123 = scmp.eq.s32.totalorder %s22, 0
      %p124 = por %p122, %p123
      %s125 = ssub.s32 %s23, %s42
      %p126 = scmp.eq.s32.totalorder %s125, 0
      %s128 = sadd.s32 %s127, 1
      %s129 = scalar_select %p126, %s127, %s128
      %p132 = pneg %p126
      %p133 = scmp.eq.s32.totalorder %s16, 3
      %p134 = por %p132, %p133
      %p135 = scmp.ne.s32.totalorder %s127, %s130
      %p136 = scmp.eq.s32.totalorder %s16, 0
      %p137 = por %p135, %p136
      %p138 = scmp.ne.s32.totalorder %s127, %s130
      %p139 = scmp.eq.s32.totalorder %s21, 3
      %p140 = por %p138, %p139
      %p141 = scmp.ne.s32.totalorder %s130, %s131
      %p142 = scmp.eq.s32.totalorder %s21, 0
      %p143 = por %p141, %p142
      %p144 = scmp.ne.s32.totalorder %s130, %s131
      %p145 = scmp.eq.s32.totalorder %s22, 3
      %p146 = por %p144, %p145
      %p148 = scmp.ne.s32.totalorder %s131, %s147
      %p149 = scmp.eq.s32.totalorder %s22, 0
      %p150 = por %p148, %p149
      %s151 = ssub.s32 %s23, %s42
      %p152 = scmp.eq.s32.totalorder %s151, 0
      %s154 = sadd.s32 %s153, 1
      %s155 = scalar_select %p152, %s153, %s154
      %p158 = pneg %p152
      %p159 = scmp.eq.s32.totalorder %s16, 3
      %p160 = por %p158, %p159
      %p161 = scmp.ne.s32.totalorder %s153, %s156
      %p162 = scmp.eq.s32.totalorder %s16, 0
      %p163 = por %p161, %p162
      %p164 = scmp.ne.s32.totalorder %s153, %s156
      %p165 = scmp.eq.s32.totalorder %s21, 3
      %p166 = por %p164, %p165
      %p167 = scmp.ne.s32.totalorder %s156, %s157
      %p168 = scmp.eq.s32.totalorder %s21, 0
      %p169 = por %p167, %p168
      %p170 = scmp.ne.s32.totalorder %s156, %s157
      %p171 = scmp.eq.s32.totalorder %s22, 3
      %p172 = por %p170, %p171
      %p174 = scmp.ne.s32.totalorder %s157, %s173
      %p175 = scmp.eq.s32.totalorder %s22, 0
      %p176 = por %p174, %p175
      %s177 = ssub.s32 %s23, %s42
      %p178 = scmp.eq.s32.totalorder %s177, 0
      %s180 = sadd.s32 %s179, 1
      %s181 = scalar_select %p178, %s179, %s180
      %p184 = pneg %p178
      %p185 = scmp.eq.s32.totalorder %s16, 3
      %p186 = por %p184, %p185
      %p187 = scmp.ne.s32.totalorder %s179, %s182
      %p188 = scmp.eq.s32.totalorder %s16, 0
      %p189 = por %p187, %p188
      %p190 = scmp.ne.s32.totalorder %s179, %s182
      %p191 = scmp.eq.s32.totalorder %s21, 3
      %p192 = por %p190, %p191
      %p193 = scmp.ne.s32.totalorder %s182, %s183
      %p194 = scmp.eq.s32.totalorder %s21, 0
      %p195 = por %p193, %p194
      %p196 = scmp.ne.s32.totalorder %s182, %s183
      %p197 = scmp.eq.s32.totalorder %s22, 3
      %p198 = por %p196, %p197
      %p200 = scmp.ne.s32.totalorder %s183, %s199
      %p201 = scmp.eq.s32.totalorder %s22, 0
      %p202 = por %p200, %p201
      %s203 = ssub.s32 %s23, %s42
      %p204 = scmp.eq.s32.totalorder %s203, 0
      %s206 = sadd.s32 %s205, 1
      %s207 = scalar_select %p204, %s205, %s206
      %p210 = pneg %p204
      %p211 = scmp.eq.s32.totalorder %s16, 3
      %p212 = por %p210, %p211
      %p213 = scmp.ne.s32.totalorder %s205, %s208
      %p214 = scmp.eq.s32.totalorder %s16, 0
      %p215 = por %p213, %p214
      %p216 = scmp.ne.s32.totalorder %s205, %s208
      %p217 = scmp.eq.s32.totalorder %s21, 3
      %p218 = por %p216, %p217
      %p219 = scmp.ne.s32.totalorder %s208, %s209
      %p220 = scmp.eq.s32.totalorder %s21, 0
      %p221 = por %p219, %p220
      %p222 = scmp.ne.s32.totalorder %s208, %s209
      %p223 = scmp.eq.s32.totalorder %s22, 3
      %p224 = por %p222, %p223
      %p226 = scmp.ne.s32.totalorder %s209, %s225
      %p227 = scmp.eq.s32.totalorder %s22, 0
      %p228 = por %p226, %p227
      %p229 = scmp.eq.s32.totalorder %s24, 1
      %s230 = scalar_select %p229, %s25, 0
      %p231 = scmp.eq.s32.totalorder %s38, 1
      %s232 = scalar_select %p231, %s34, 0
      %s233 = ssub.s32 %s230, %s232
      %s234 = ssub.s32 %s23, %s42
      %s235 = sor.u32 %s233, %s234
      %p236 = scmp.eq.s32.totalorder %s235, 0
      %s238 = sadd.s32 %s237, 1
      %s239 = scalar_select %p236, %s237, %s238
      %p242 = pneg %p236
      %p243 = scmp.eq.s32.totalorder %s16, 3
      %p244 = por %p242, %p243
      %p245 = scmp.ne.s32.totalorder %s237, %s240
      %p246 = scmp.eq.s32.totalorder %s16, 0
      %p247 = por %p245, %p246
      %p248 = scmp.ne.s32.totalorder %s237, %s240
      %p249 = scmp.eq.s32.totalorder %s21, 3
      %p250 = por %p248, %p249
      %p251 = scmp.ne.s32.totalorder %s240, %s241
      %p252 = scmp.eq.s32.totalorder %s21, 0
      %p253 = por %p251, %p252
      %p254 = scmp.ne.s32.totalorder %s240, %s241
      %p255 = scmp.eq.s32.totalorder %s22, 3
      %p256 = por %p254, %p255
      %p258 = scmp.ne.s32.totalorder %s241, %s257
      %p259 = scmp.eq.s32.totalorder %s22, 0
      %p260 = por %p258, %p259
      %p261 = scmp.le.s32.totalorder 1, %s16
      %p262 = scmp.lt.s32.totalorder %s16, 5
      %p263 = pnand %p261, %p262
      %p264 = pneg %p263
      // Predicated region
      $region9: #{tpu_custom_call.1} parent=5 // pred_check
        _
      $region10: #{tpu_custom_call.1} parent=5 // pred_check_branch
        %266 = sbr.rel (%p263) target = $region12
      $region11: #{tpu_custom_call.1} parent=5 // pred_region
        %s267 = ssub.s32 %s16, 1
        // Predicated region
        $region13: #{tpu_custom_call.1} parent=11 // pred_check
          %p268 = pneg %p91
        $region14: #{tpu_custom_call.1} parent=11 // pred_check_branch
          %270 = sbr.rel (%p268) target = $region16
        $region15: #{tpu_custom_call.1} parent=11 // pred_region
          %p271 = scmp.lt.s32.totalorder %s26, 0
          %s272 = scalar_select %p271, %s26, 0
          %s273 = smul.addr %s272, 8
          %s274 = scalar_lea.vmem %s1, %s273
        $region16: #{tpu_custom_call.1} parent=11 // pred_fallthru
          _
        // Predicated region
        $region17: #{tpu_custom_call.1} parent=11 // pred_check
          %p275 = pneg %p117
        $region18: #{tpu_custom_call.1} parent=11 // pred_check_branch
          %277 = sbr.rel (%p275) target = $region20
        $region19: #{tpu_custom_call.1} parent=11 // pred_region
          %p278 = scmp.lt.s32.totalorder %s26, 0
          %s279 = scalar_select %p278, %s26, 0
          %s280 = scalar_lea.vmem %s2, %s279
        $region20: #{tpu_custom_call.1} parent=11 // pred_fallthru
          _
        // Predicated region
        $region21: #{tpu_custom_call.1} parent=11 // pred_check
          %p281 = pneg %p143
        $region22: #{tpu_custom_call.1} parent=11 // pred_check_branch
          %283 = sbr.rel (%p281) target = $region24
        $region23: #{tpu_custom_call.1} parent=11 // pred_region
          %p284 = scmp.lt.s32.totalorder %s26, 0
          %s285 = scalar_select %p284, %s26, 0
          %s286 = smul.addr %s285, 4
          %s287 = scalar_lea.vmem %s3, %s286
        $region24: #{tpu_custom_call.1} parent=11 // pred_fallthru
          _
        // Predicated region
        $region25: #{tpu_custom_call.1} parent=11 // pred_check
          %p288 = pneg %p169
        $region26: #{tpu_custom_call.1} parent=11 // pred_check_branch
          %290 = sbr.rel (%p288) target = $region28
        $region27: #{tpu_custom_call.1} parent=11 // pred_region
          %p291 = scmp.lt.s32.totalorder %s26, 0
          %s292 = scalar_select %p291, %s26, 0
          %s293 = scalar_lea.vmem %s4, %s292
        $region28: #{tpu_custom_call.1} parent=11 // pred_fallthru
          _
        // Predicated region
        $region29: #{tpu_custom_call.1} parent=11 // pred_check
          %p294 = pneg %p195
        $region30: #{tpu_custom_call.1} parent=11 // pred_check_branch
          %296 = sbr.rel (%p294) target = $region32
        $region31: #{tpu_custom_call.1} parent=11 // pred_region
          %p297 = scmp.lt.s32.totalorder %s26, 0
          %s298 = scalar_select %p297, %s26, 0
          %s299 = scalar_lea.vmem %s5, %s298
        $region32: #{tpu_custom_call.1} parent=11 // pred_fallthru
          _
        // Predicated region
        $region33: #{tpu_custom_call.1} parent=11 // pred_check
          %p300 = pneg %p221
        $region34: #{tpu_custom_call.1} parent=11 // pred_check_branch
          %302 = sbr.rel (%p300) target = $region36
        $region35: #{tpu_custom_call.1} parent=11 // pred_region
          %p303 = scmp.lt.s32.totalorder %s26, 0
          %s304 = scalar_select %p303, %s26, 0
          %s305 = scalar_lea.vmem %s6, %s304
        $region36: #{tpu_custom_call.1} parent=11 // pred_fallthru
          _
      $region12: #{tpu_custom_call.1} parent=5 // pred_fallthru
        _
      %p306 = scmp.lt.s32.totalorder %s16, 4
      // Predicated region
      $region37: #{tpu_custom_call.1} parent=5 // pred_check
        %p307 = pneg %p306
      $region38: #{tpu_custom_call.1} parent=5 // pred_check_branch
        %309 = sbr.rel (%p307) target = $region40
      $region39: #{tpu_custom_call.1} parent=5 // pred_region
        // Predicated region
        $region41: #{tpu_custom_call.1} parent=39 // pred_check
          %p310 = pneg %p59
        $region42: #{tpu_custom_call.1} parent=39 // pred_check_branch
          %312 = sbr.rel (%p310) target = $region44
        $region43: #{tpu_custom_call.1} parent=39 // pred_region
          %p313 = scmp.eq.s32.totalorder %s24, 0
          %s314 = scalar_select %p313, %s25, 1
          %p315 = scmp.lt.s32.totalorder %s314, 1
          %s316 = scalar_select %p315, %s314, 1
          %s317 = smul.addr %s316, 8
          %s318 = smul.addr %s317, 8
          %s319 = scalar_lea.vmem %s0, %s318
          %p320 = scmp.eq.s32.totalorder %s24, 0
          %s321 = scalar_select %p320, %s25, 1
        $region44: #{tpu_custom_call.1} parent=39 // pred_fallthru
          _
      $region40: #{tpu_custom_call.1} parent=5 // pred_fallthru
        _
      %p322 = scmp.le.s32.totalorder 1, %s16
      %p323 = scmp.lt.s32.totalorder %s16, 5
      %p324 = pnand %p322, %p323
      %p325 = pneg %p324
      // Predicated region
      $region45: #{tpu_custom_call.1} parent=5 // pred_check
        _
      $region46: #{tpu_custom_call.1} parent=5 // pred_check_branch
        %327 = sbr.rel (%p324) target = $region48
      $region47: #{tpu_custom_call.1} parent=5 // pred_region
        %s328 = ssub.s32 %s16, 1
        %p329 = scmp.eq.s32.totalorder %s27, 0
        %s330 = scalar_select %p329, %s28, 1
        %p331 = scmp.lt.s32.totalorder %s330, 1
        %s332 = scalar_select %p331, %s330, 1
        %s333 = smul.addr %s332, 8
        %s334 = smul.addr %s333, 8
        %s335 = scalar_lea.vmem %s0, %s334
        %p336 = pneg %p65
        %p337 = pneg %p62
        %p338 = scmp.lt.s32.totalorder %s26, 0
        %s339 = scalar_select %p338, %s26, 0
        %s340 = smul.addr %s339, 8
        %s341 = scalar_lea.vmem %s1, %s340
        %p342 = pneg %p91
        %p343 = pneg %p88
        %p344 = scmp.lt.s32.totalorder %s26, 0
        %s345 = scalar_select %p344, %s26, 0
        %s346 = scalar_lea.vmem %s2, %s345
        %p347 = pneg %p117
        %p348 = pneg %p114
        %p349 = scmp.lt.s32.totalorder %s26, 0
        %s350 = scalar_select %p349, %s26, 0
        %s351 = smul.addr %s350, 4
        %s352 = scalar_lea.vmem %s3, %s351
        %p353 = pneg %p143
        %p354 = pneg %p140
        %p355 = scmp.lt.s32.totalorder %s26, 0
        %s356 = scalar_select %p355, %s26, 0
        %s357 = scalar_lea.vmem %s4, %s356
        %p358 = pneg %p169
        %p359 = pneg %p166
        %p360 = scmp.lt.s32.totalorder %s26, 0
        %s361 = scalar_select %p360, %s26, 0
        %s362 = scalar_lea.vmem %s5, %s361
        %p363 = pneg %p195
        %p364 = pneg %p192
        %p365 = scmp.lt.s32.totalorder %s26, 0
        %s366 = scalar_select %p365, %s26, 0
        %s367 = scalar_lea.vmem %s6, %s366
        %p368 = pneg %p221
        %p369 = pneg %p218
        %p370 = pneg %p253
        %p371 = pneg %p250
        %s372 = sand.u32 %s240, 1
        %s373 = scalar_lea.sflag [#allocation10], %s372
        %s374 = sand.u32 %s240, 1
        %s375 = smul.addr %s374, 64
        %s376 = scalar_lea.vmem [#allocation9], %s375
        %p377 = scmp.eq.s32.totalorder %s27, 0
        %s378 = scalar_select %p377, %s28, 1
        %p379 = scmp.lt.s32.totalorder %s378, 1
        %s380 = scalar_select %p379, %s378, 1
        %s381 = smul.addr %s380, 8
        %s382 = smul.addr %s381, 8
        %s383 = scalar_lea.vmem %s0, %s382
        %p384 = scmp.eq.s32.totalorder %s27, 0
        %s385 = scalar_select %p384, %s28, 1
        %p386 = scmp.lt.s32.totalorder %s26, 0
        %s387 = scalar_select %p386, %s26, 0
        %s388 = smul.addr %s387, 8
        %s389 = scalar_lea.vmem %s1, %s388
        %p390 = scmp.lt.s32.totalorder %s26, 0
        %s391 = scalar_select %p390, %s26, 0
        %s392 = scalar_lea.vmem %s2, %s391
        %p393 = scmp.lt.s32.totalorder %s26, 0
        %s394 = scalar_select %p393, %s26, 0
        %s395 = smul.addr %s394, 4
        %s396 = scalar_lea.vmem %s3, %s395
        %p397 = scmp.lt.s32.totalorder %s26, 0
        %s398 = scalar_select %p397, %s26, 0
        %s399 = scalar_lea.vmem %s4, %s398
        %p400 = scmp.lt.s32.totalorder %s26, 0
        %s401 = scalar_select %p400, %s26, 0
        %s402 = scalar_lea.vmem %s5, %s401
        %p403 = scmp.lt.s32.totalorder %s26, 0
        %s404 = scalar_select %p403, %s26, 0
        %s405 = scalar_lea.vmem %s6, %s404
        %p406 = scmp.eq.s32.totalorder %s27, 1
        %s407 = scalar_select %p406, %s28, 0
        %p409 = scmp.eq.s32.totalorder %s27, 0
        // Predicated region
        $region49: #{tpu_custom_call.1} parent=47 // pred_check
          %p410 = pneg %p409
        $region50: #{tpu_custom_call.1} parent=47 // pred_check_branch
          %412 = sbr.rel (%p410) target = $region52
        $region51: #{tpu_custom_call.1} parent=47 // pred_region
          %p413 = scmp.eq.s32.totalorder %s28, 0
          // Predicated region
          $region53: #{tpu_custom_call.1} parent=51 // pred_check
            %p414 = pneg %p413
          $region54: #{tpu_custom_call.1} parent=51 // pred_check_branch
            %416 = sbr.rel (%p414) target = $region56
          $region55: #{tpu_custom_call.1} parent=51 // pred_region
            %vm417 = vcmask 523264
            %418 = vst.msk [vmem:[#allocation2] sm:$0xff] %vm417, 0.0
            %vm419 = vcmask 517120
            %420 = vst.msk [vmem:[#allocation2 + $0x8] sm:$0x3] %vm419, 0.0
            %421 = vst.msk [vmem:[#allocation2 + $0x10] sm:$0xff] %vm417, 0.0
            %422 = vst.msk [vmem:[#allocation2 + $0x18] sm:$0x3] %vm419, 0.0
            %423 = vst.msk [vmem:[#allocation2 + $0x20] sm:$0xff] %vm417, 0.0
            %424 = vst.msk [vmem:[#allocation2 + $0x28] sm:$0x3] %vm419, 0.0
            %425 = vst.msk [vmem:[#allocation2 + $0x30] sm:$0xff] %vm417, 0.0
            %426 = vst.msk [vmem:[#allocation2 + $0x38] sm:$0x3] %vm419, 0.0
            %427 = vst.msk [vmem:[#allocation2 + $0x40] sm:$0xff] %vm417, 0.0
            %428 = vst.msk [vmem:[#allocation2 + $0x48] sm:$0x3] %vm419, 0.0
            %429 = vst.msk [vmem:[#allocation2 + $0x50] sm:$0xff] %vm417, 0.0
            %430 = vst.msk [vmem:[#allocation2 + $0x58] sm:$0x3] %vm419, 0.0
            %431 = vst.msk [vmem:[#allocation2 + $0x60] sm:$0xff] %vm417, 0.0
            %432 = vst.msk [vmem:[#allocation2 + $0x68] sm:$0x3] %vm419, 0.0
            %433 = vst.msk [vmem:[#allocation2 + $0x70] sm:$0xff] %vm417, 0.0
            %434 = vst.msk [vmem:[#allocation2 + $0x78] sm:$0x3] %vm419, 0.0
            %435 = vst.msk [vmem:[#allocation2 + $0x80] sm:$0xff] %vm417, 0.0
            %436 = vst.msk [vmem:[#allocation2 + $0x88] sm:$0x3] %vm419, 0.0
            %437 = vst.msk [vmem:[#allocation2 + $0x90] sm:$0xff] %vm417, 0.0
            %438 = vst.msk [vmem:[#allocation2 + $0x98] sm:$0x3] %vm419, 0.0
            %vm439 = vcmask 516096
            %440 = vst.msk [vmem:[#allocation4] sm:$0x1] %vm439, 0.0
            %441 = vst.msk [vmem:[#allocation5] sm:$0x1] %vm439, 0.0
          $region56: #{tpu_custom_call.1} parent=51 // pred_fallthru
            _
          %v442 = vld [vmem:[%s383] sm:$0xff]
          %v443 = vld [vmem:[%s383 + $0x8] sm:$0xff]
          %v444 = vld [vmem:[%s383 + $0x10] sm:$0xff]
          %v445 = vld [vmem:[%s383 + $0x18] sm:$0xff]
          %v446 = vld [vmem:[%s383 + $0x20] sm:$0xff]
          %v447 = vld [vmem:[%s383 + $0x28] sm:$0xff]
          %v448 = vld [vmem:[%s383 + $0x30] sm:$0xff]
          %v449 = vld [vmem:[%s383 + $0x38] sm:$0xff]
          %v450 = vpack.c.bf16 %v443, %v442
          %v451 = vpack.c.bf16 %v445, %v444
          %v452 = vpack.c.bf16 %v447, %v446
          %v453 = vpack.c.bf16 %v449, %v448
          %v454 = vld [vmem:[%s389] sm:$0xff]
          %v455 = vld [vmem:[%s389 + $0x8] sm:$0xff]
          %v456 = vld [vmem:[%s389 + $0x10] sm:$0xff]
          %v457 = vld [vmem:[%s389 + $0x18] sm:$0xff]
          %v458 = vpack.c.bf16 %v455, %v454
          %v459 = vpack.c.bf16 %v457, %v456
          %v460 = vld [vmem:[%s392] sm:$0x1]
          %v462 = vperm.slane %v460, 0
          %vm464 = vcmask 261120
          %v466 = vsel %vm464, %v450, 0
          %v469 = vsel %vm464, %v451, 0
          %v472 = vsel %vm464, %v452, 0
          %v475 = vsel %vm464, %v453, 0
          %477 = vmatpush.bf16.msra.mxu0 0
          %478 = vmatpush.bf16.msra.mxu0 0
          %479 = vmatpush.bf16.msra.mxu0 0
          %480 = vmatpush.bf16.msra.mxu0 0
          %481 = vmatpush.bf16.msra.mxu0 0
          %482 = vmatpush.bf16.msra.mxu0 0
          %483 = vmatpush.bf16.msra.mxu0 %v459
          %484 = vmatpush.bf16.msra.mxu0 %v458
          %485 = vmatmul.bf16.gmra.mxu0 %v466
          %v486 = vpop.f32.mrf.mxu0
          %v487 = vadd.f32 %v462, %v486
          %v488 = vpop.f32.mrf.mxu0
          %v489 = vadd.f32 %v462, %v488
          %490 = vmatmul.bf16.gmra.mxu0 %v469
          %v491 = vpop.f32.mrf.mxu0
          %v492 = vadd.f32 %v462, %v491
          %v493 = vpop.f32.mrf.mxu0
          %v494 = vadd.f32 %v462, %v493
          %495 = vmatmul.bf16.gmra.mxu0 %v472
          %v496 = vpop.f32.mrf.mxu0
          %v497 = vadd.f32 %v462, %v496
          %v498 = vpop.f32.mrf.mxu0
          %v499 = vadd.f32 %v462, %v498
          %500 = vmatmul.bf16.gmra.mxu0 %v475
          %v501 = vpop.f32.mrf.mxu0
          %v502 = vadd.f32 %v462, %v501
          %v503 = vpop.f32.mrf.mxu0
          %v504 = vadd.f32 %v462, %v503
          %505 = vdwg.mxu0
          %s506 = scalar_lea.vmem [#allocation2], 16
          %vm507 = vcmask 523264
          %508 = vst.msk [vmem:[%s506 + $0x1] sm:$0xff] %vm507, %v487
          %509 = vst.msk [vmem:[%s506 + $0x11] sm:$0xff] %vm507, %v489
          %510 = vst.msk [vmem:[%s506 + $0x21] sm:$0xff] %vm507, %v492
          %511 = vst.msk [vmem:[%s506 + $0x31] sm:$0xff] %vm507, %v494
          %512 = vst.msk [vmem:[%s506 + $0x41] sm:$0xff] %vm507, %v497
          %513 = vst.msk [vmem:[%s506 + $0x51] sm:$0xff] %vm507, %v499
          %514 = vst.msk [vmem:[%s506 + $0x61] sm:$0xff] %vm507, %v502
          %515 = vst.msk [vmem:[%s506 + $0x71] sm:$0xff] %vm507, %v504
          %v516 = vld [vmem:[#allocation2] sm:$0xff]
          %v517 = vld [vmem:[#allocation2 + $0x10] sm:$0xff]
          %v518 = vld [vmem:[#allocation2 + $0x20] sm:$0xff]
          %v519 = vld [vmem:[#allocation2 + $0x30] sm:$0xff]
          %v520 = vld [vmem:[#allocation2 + $0x40] sm:$0xff]
          %v521 = vld [vmem:[#allocation2 + $0x50] sm:$0xff]
          %v522 = vld [vmem:[#allocation2 + $0x60] sm:$0xff]
          %v523 = vld [vmem:[#allocation2 + $0x70] sm:$0xff]
          %v524 = vld [vmem:[%s396] sm:$0x1]
          %v525 = vperm.slane %v524, 0
          %v526 = vmul.f32 %v516, %v525
          %v527 = vmul.f32 %v517, %v525
          %v528 = vmul.f32 %v518, %v525
          %v529 = vmul.f32 %v519, %v525
          %v530 = vmul.f32 %v520, %v525
          %v531 = vmul.f32 %v521, %v525
          %v532 = vmul.f32 %v522, %v525
          %v533 = vmul.f32 %v523, %v525
          %v534 = vadd.f32 %v526, 0.0
          %v535 = vadd.f32 %v527, 0.0
          %v536 = vadd.f32 %v528, 0.0
          %v537 = vadd.f32 %v529, 0.0
          %v538 = vadd.f32 %v530, 0.0
          %v539 = vadd.f32 %v531, 0.0
          %v540 = vadd.f32 %v532, 0.0
          %v541 = vadd.f32 %v533, 0.0
          %v542 = vld [vmem:[#allocation2 + $0x1] sm:$0xff]
          %v543 = vld [vmem:[#allocation2 + $0x11] sm:$0xff]
          %v544 = vld [vmem:[#allocation2 + $0x21] sm:$0xff]
          %v545 = vld [vmem:[#allocation2 + $0x31] sm:$0xff]
          %v546 = vld [vmem:[#allocation2 + $0x41] sm:$0xff]
          %v547 = vld [vmem:[#allocation2 + $0x51] sm:$0xff]
          %v548 = vld [vmem:[#allocation2 + $0x61] sm:$0xff]
          %v549 = vld [vmem:[#allocation2 + $0x71] sm:$0xff]
          %v550 = vld [vmem:[%s396 + $0x1] sm:$0x1]
          %v551 = vperm.slane %v550, 0
          %v552 = vmul.f32 %v542, %v551
          %v553 = vmul.f32 %v543, %v551
          %v554 = vmul.f32 %v544, %v551
          %v555 = vmul.f32 %v545, %v551
          %v556 = vmul.f32 %v546, %v551
          %v557 = vmul.f32 %v547, %v551
          %v558 = vmul.f32 %v548, %v551
          %v559 = vmul.f32 %v549, %v551
          %v560 = vadd.f32 %v534, %v552
          %v561 = vadd.f32 %v535, %v553
          %v562 = vadd.f32 %v536, %v554
          %v563 = vadd.f32 %v537, %v555
          %v564 = vadd.f32 %v538, %v556
          %v565 = vadd.f32 %v539, %v557
          %v566 = vadd.f32 %v540, %v558
          %v567 = vadd.f32 %v541, %v559
          %v568 = vld [vmem:[#allocation2 + $0x2] sm:$0xff]
          %v569 = vld [vmem:[#allocation2 + $0x12] sm:$0xff]
          %v570 = vld [vmem:[#allocation2 + $0x22] sm:$0xff]
          %v571 = vld [vmem:[#allocation2 + $0x32] sm:$0xff]
          %v572 = vld [vmem:[#allocation2 + $0x42] sm:$0xff]
          %v573 = vld [vmem:[#allocation2 + $0x52] sm:$0xff]
          %v574 = vld [vmem:[#allocation2 + $0x62] sm:$0xff]
          %v575 = vld [vmem:[#allocation2 + $0x72] sm:$0xff]
          %v576 = vld [vmem:[%s396 + $0x2] sm:$0x1]
          %v577 = vperm.slane %v576, 0
          %v578 = vmul.f32 %v568, %v577
          %v579 = vmul.f32 %v569, %v577
          %v580 = vmul.f32 %v570, %v577
          %v581 = vmul.f32 %v571, %v577
          %v582 = vmul.f32 %v572, %v577
          %v583 = vmul.f32 %v573, %v577
          %v584 = vmul.f32 %v574, %v577
          %v585 = vmul.f32 %v575, %v577
          %v586 = vadd.f32 %v560, %v578
          %v587 = vadd.f32 %v561, %v579
          %v588 = vadd.f32 %v562, %v580
          %v589 = vadd.f32 %v563, %v581
          %v590 = vadd.f32 %v564, %v582
          %v591 = vadd.f32 %v565, %v583
          %v592 = vadd.f32 %v566, %v584
          %v593 = vadd.f32 %v567, %v585
          %v594 = vld [vmem:[%s506] sm:$0xff]
          %v595 = vld [vmem:[%s506 + $0x10] sm:$0xff]
          %v596 = vld [vmem:[%s506 + $0x20] sm:$0xff]
          %v597 = vld [vmem:[%s506 + $0x30] sm:$0xff]
          %v598 = vld [vmem:[%s506 + $0x40] sm:$0xff]
          %v599 = vld [vmem:[%s506 + $0x50] sm:$0xff]
          %v600 = vld [vmem:[%s506 + $0x60] sm:$0xff]
          %v601 = vld [vmem:[%s506 + $0x70] sm:$0xff]
          %s602 = scalar_lea.vmem %s396, 4
          %v603 = vld [vmem:[%s602] sm:$0x1]
          %v604 = vperm.slane %v603, 0
          %v605 = vmul.f32 %v594, %v604
          %v606 = vmul.f32 %v595, %v604
          %v607 = vmul.f32 %v596, %v604
          %v608 = vmul.f32 %v597, %v604
          %v609 = vmul.f32 %v598, %v604
          %v610 = vmul.f32 %v599, %v604
          %v611 = vmul.f32 %v600, %v604
          %v612 = vmul.f32 %v601, %v604
          %v613 = vadd.f32 %v586, %v605
          %v614 = vadd.f32 %v587, %v606
          %v615 = vadd.f32 %v588, %v607
          %v616 = vadd.f32 %v589, %v608
          %v617 = vadd.f32 %v590, %v609
          %v618 = vadd.f32 %v591, %v610
          %v619 = vadd.f32 %v592, %v611
          %v620 = vadd.f32 %v593, %v612
          %v621 = vld [vmem:[%s506 + $0x1] sm:$0xff]
          %v622 = vld [vmem:[%s506 + $0x11] sm:$0xff]
          %v623 = vld [vmem:[%s506 + $0x21] sm:$0xff]
          %v624 = vld [vmem:[%s506 + $0x31] sm:$0xff]
          %v625 = vld [vmem:[%s506 + $0x41] sm:$0xff]
          %v626 = vld [vmem:[%s506 + $0x51] sm:$0xff]
          %v627 = vld [vmem:[%s506 + $0x61] sm:$0xff]
          %v628 = vld [vmem:[%s506 + $0x71] sm:$0xff]
          %v629 = vld [vmem:[%s602 + $0x1] sm:$0x1]
          %v630 = vperm.slane %v629, 0
          %v631 = vmul.f32 %v621, %v630
          %v632 = vmul.f32 %v622, %v630
          %v633 = vmul.f32 %v623, %v630
          %v634 = vmul.f32 %v624, %v630
          %v635 = vmul.f32 %v625, %v630
          %v636 = vmul.f32 %v626, %v630
          %v637 = vmul.f32 %v627, %v630
          %v638 = vmul.f32 %v628, %v630
          %v639 = vadd.f32 %v613, %v631
          %v640 = vadd.f32 %v614, %v632
          %v641 = vadd.f32 %v615, %v633
          %v642 = vadd.f32 %v616, %v634
          %v643 = vadd.f32 %v617, %v635
          %v644 = vadd.f32 %v618, %v636
          %v645 = vadd.f32 %v619, %v637
          %v646 = vadd.f32 %v620, %v638
          %v647 = vld [vmem:[%s506 + $0x2] sm:$0xff]
          %v648 = vld [vmem:[%s506 + $0x12] sm:$0xff]
          %v649 = vld [vmem:[%s506 + $0x22] sm:$0xff]
          %v650 = vld [vmem:[%s506 + $0x32] sm:$0xff]
          %v651 = vld [vmem:[%s506 + $0x42] sm:$0xff]
          %v652 = vld [vmem:[%s506 + $0x52] sm:$0xff]
          %v653 = vld [vmem:[%s506 + $0x62] sm:$0xff]
          %v654 = vld [vmem:[%s506 + $0x72] sm:$0xff]
          %v655 = vld [vmem:[%s602 + $0x2] sm:$0x1]
          %v656 = vperm.slane %v655, 0
          %v657 = vmul.f32 %v647, %v656
          %v658 = vmul.f32 %v648, %v656
          %v659 = vmul.f32 %v649, %v656
          %v660 = vmul.f32 %v650, %v656
          %v661 = vmul.f32 %v651, %v656
          %v662 = vmul.f32 %v652, %v656
          %v663 = vmul.f32 %v653, %v656
          %v664 = vmul.f32 %v654, %v656
          %v665 = vadd.f32 %v639, %v657
          %v666 = vadd.f32 %v640, %v658
          %v667 = vadd.f32 %v641, %v659
          %v668 = vadd.f32 %v642, %v660
          %v669 = vadd.f32 %v643, %v661
          %v670 = vadd.f32 %v644, %v662
          %v671 = vadd.f32 %v645, %v663
          %v672 = vadd.f32 %v646, %v664
          %s673 = scalar_lea.vmem [#allocation2], 32
          %v674 = vld [vmem:[%s673] sm:$0xff]
          %v675 = vld [vmem:[%s673 + $0x10] sm:$0xff]
          %v676 = vld [vmem:[%s673 + $0x20] sm:$0xff]
          %v677 = vld [vmem:[%s673 + $0x30] sm:$0xff]
          %v678 = vld [vmem:[%s673 + $0x40] sm:$0xff]
          %v679 = vld [vmem:[%s673 + $0x50] sm:$0xff]
          %v680 = vld [vmem:[%s673 + $0x60] sm:$0xff]
          %v681 = vld [vmem:[%s673 + $0x70] sm:$0xff]
          %s682 = scalar_lea.vmem %s396, 8
          %v683 = vld [vmem:[%s682] sm:$0x1]
          %v684 = vperm.slane %v683, 0
          %v685 = vmul.f32 %v674, %v684
          %v686 = vmul.f32 %v675, %v684
          %v687 = vmul.f32 %v676, %v684
          %v688 = vmul.f32 %v677, %v684
          %v689 = vmul.f32 %v678, %v684
          %v690 = vmul.f32 %v679, %v684
          %v691 = vmul.f32 %v680, %v684
          %v692 = vmul.f32 %v681, %v684
          %v693 = vadd.f32 %v665, %v685
          %v694 = vadd.f32 %v666, %v686
          %v695 = vadd.f32 %v667, %v687
          %v696 = vadd.f32 %v668, %v688
          %v697 = vadd.f32 %v669, %v689
          %v698 = vadd.f32 %v670, %v690
          %v699 = vadd.f32 %v671, %v691
          %v700 = vadd.f32 %v672, %v692
          %v701 = vld [vmem:[%s673 + $0x1] sm:$0xff]
          %v702 = vld [vmem:[%s673 + $0x11] sm:$0xff]
          %v703 = vld [vmem:[%s673 + $0x21] sm:$0xff]
          %v704 = vld [vmem:[%s673 + $0x31] sm:$0xff]
          %v705 = vld [vmem:[%s673 + $0x41] sm:$0xff]
          %v706 = vld [vmem:[%s673 + $0x51] sm:$0xff]
          %v707 = vld [vmem:[%s673 + $0x61] sm:$0xff]
          %v708 = vld [vmem:[%s673 + $0x71] sm:$0xff]
          %v709 = vld [vmem:[%s682 + $0x1] sm:$0x1]
          %v710 = vperm.slane %v709, 0
          %v711 = vmul.f32 %v701, %v710
          %v712 = vmul.f32 %v702, %v710
          %v713 = vmul.f32 %v703, %v710
          %v714 = vmul.f32 %v704, %v710
          %v715 = vmul.f32 %v705, %v710
          %v716 = vmul.f32 %v706, %v710
          %v717 = vmul.f32 %v707, %v710
          %v718 = vmul.f32 %v708, %v710
          %v719 = vadd.f32 %v693, %v711
          %v720 = vadd.f32 %v694, %v712
          %v721 = vadd.f32 %v695, %v713
          %v722 = vadd.f32 %v696, %v714
          %v723 = vadd.f32 %v697, %v715
          %v724 = vadd.f32 %v698, %v716
          %v725 = vadd.f32 %v699, %v717
          %v726 = vadd.f32 %v700, %v718
          %v727 = vld [vmem:[%s673 + $0x2] sm:$0xff]
          %v728 = vld [vmem:[%s673 + $0x12] sm:$0xff]
          %v729 = vld [vmem:[%s673 + $0x22] sm:$0xff]
          %v730 = vld [vmem:[%s673 + $0x32] sm:$0xff]
          %v731 = vld [vmem:[%s673 + $0x42] sm:$0xff]
          %v732 = vld [vmem:[%s673 + $0x52] sm:$0xff]
          %v733 = vld [vmem:[%s673 + $0x62] sm:$0xff]
          %v734 = vld [vmem:[%s673 + $0x72] sm:$0xff]
          %v735 = vld [vmem:[%s682 + $0x2] sm:$0x1]
          %v736 = vperm.slane %v735, 0
          %v737 = vmul.f32 %v727, %v736
          %v738 = vmul.f32 %v728, %v736
          %v739 = vmul.f32 %v729, %v736
          %v740 = vmul.f32 %v730, %v736
          %v741 = vmul.f32 %v731, %v736
          %v742 = vmul.f32 %v732, %v736
          %v743 = vmul.f32 %v733, %v736
          %v744 = vmul.f32 %v734, %v736
          %v745 = vadd.f32 %v719, %v737
          %v746 = vadd.f32 %v720, %v738
          %v747 = vadd.f32 %v721, %v739
          %v748 = vadd.f32 %v722, %v740
          %v749 = vadd.f32 %v723, %v741
          %v750 = vadd.f32 %v724, %v742
          %v751 = vadd.f32 %v725, %v743
          %v752 = vadd.f32 %v726, %v744
          %v753 = vld [vmem:[%s399] sm:$0x1]
          %v755 = vperm.slane %v753, 0
          %v757 = vadd.f32 %v745, %v755
          %v758 = vadd.f32 %v746, %v755
          %v759 = vadd.f32 %v747, %v755
          %v760 = vadd.f32 %v748, %v755
          %v761 = vadd.f32 %v749, %v755
          %v762 = vadd.f32 %v750, %v755
          %v763 = vadd.f32 %v751, %v755
          %v764 = vadd.f32 %v752, %v755
          %s765 = smul.u32 %s28, 64
          %s766 = scalar_lea.vmem [#allocation3], %s765
          %767 = vst.msk [vmem:[%s766] sm:$0xff] %vm507, %v757
          %768 = vst.msk [vmem:[%s766 + $0x8] sm:$0xff] %vm507, %v758
          %769 = vst.msk [vmem:[%s766 + $0x10] sm:$0xff] %vm507, %v759
          %770 = vst.msk [vmem:[%s766 + $0x18] sm:$0xff] %vm507, %v760
          %771 = vst.msk [vmem:[%s766 + $0x20] sm:$0xff] %vm507, %v761
          %772 = vst.msk [vmem:[%s766 + $0x28] sm:$0xff] %vm507, %v762
          %773 = vst.msk [vmem:[%s766 + $0x30] sm:$0xff] %vm507, %v763
          %774 = vst.msk [vmem:[%s766 + $0x38] sm:$0xff] %vm507, %v764
          // Predicated region
          $region57: #{tpu_custom_call.1} parent=51 // pred_check
            %p775 = pneg %p413
          $region58: #{tpu_custom_call.1} parent=51 // pred_check_branch
            %777 = sbr.rel (%p775) target = $region60
          $region59: #{tpu_custom_call.1} parent=51 // pred_region
            %v778 = vadd.f32 %v757, 0.0
            %v779 = vadd.f32 %v758, 0.0
            %v780 = vadd.f32 %v759, 0.0
            %v781 = vadd.f32 %v760, 0.0
            %v782 = vadd.f32 %v761, 0.0
            %v783 = vadd.f32 %v762, 0.0
            %v784 = vadd.f32 %v763, 0.0
            %v785 = vadd.f32 %v764, 0.0
            %v786 = vsel %vm507, %v778, 0.0
            %v787 = vsel %vm507, %v779, 0.0
            %v788 = vadd.f32 %v786, %v787
            %v789 = vsel %vm507, %v780, 0.0
            %v790 = vadd.f32 %v788, %v789
            %v791 = vsel %vm507, %v781, 0.0
            %v792 = vadd.f32 %v790, %v791
            %v793 = vsel %vm507, %v782, 0.0
            %v794 = vadd.f32 %v792, %v793
            %v795 = vsel %vm507, %v783, 0.0
            %v796 = vadd.f32 %v794, %v795
            %v797 = vsel %vm507, %v784, 0.0
            %v798 = vadd.f32 %v796, %v797
            %v799 = vsel %vm507, %v785, 0.0
            %v800 = vadd.f32 %v798, %v799
            %v801 = vrot.slane %v800, 4
            %v802 = vadd.f32 %v800, %v801
            %v803 = vrot.slane %v802, 2
            %v804 = vadd.f32 %v802, %v803
            %v805 = vrot.slane %v804, 1
            %v806 = vadd.f32 %v804, %v805
            %v807 = vmul.f32 %v806, 0.015625
            %vm808 = vcmask 516096
            %809 = vst.msk [vmem:[#allocation6] sm:$0x1] %vm808, %v807
          $region60: #{tpu_custom_call.1} parent=51 // pred_fallthru
            _
          %v810 = vld [vmem:[#allocation6] sm:$0x1]
          %v812 = vperm.slane %v810, 0
          %v814 = vsub.f32 %v757, %v812
          %v815 = vsub.f32 %v758, %v812
          %v816 = vsub.f32 %v759, %v812
          %v817 = vsub.f32 %v760, %v812
          %v818 = vsub.f32 %v761, %v812
          %v819 = vsub.f32 %v762, %v812
          %v820 = vsub.f32 %v763, %v812
          %v821 = vsub.f32 %v764, %v812
          %v822 = vld [vmem:[#allocation4] sm:$0x1]
          %v823 = vadd.f32 %v814, 0.0
          %v824 = vadd.f32 %v815, 0.0
          %v825 = vadd.f32 %v816, 0.0
          %v826 = vadd.f32 %v817, 0.0
          %v827 = vadd.f32 %v818, 0.0
          %v828 = vadd.f32 %v819, 0.0
          %v829 = vadd.f32 %v820, 0.0
          %v830 = vadd.f32 %v821, 0.0
          %v831 = vsel %vm507, %v823, 0.0
          %v832 = vsel %vm507, %v824, 0.0
          %v833 = vadd.f32 %v831, %v832
          %v834 = vsel %vm507, %v825, 0.0
          %v835 = vadd.f32 %v833, %v834
          %v836 = vsel %vm507, %v826, 0.0
          %v837 = vadd.f32 %v835, %v836
          %v838 = vsel %vm507, %v827, 0.0
          %v839 = vadd.f32 %v837, %v838
          %v840 = vsel %vm507, %v828, 0.0
          %v841 = vadd.f32 %v839, %v840
          %v842 = vsel %vm507, %v829, 0.0
          %v843 = vadd.f32 %v841, %v842
          %v844 = vsel %vm507, %v830, 0.0
          %v845 = vadd.f32 %v843, %v844
          %v846 = vrot.slane %v845, 4
          %v847 = vadd.f32 %v845, %v846
          %v848 = vrot.slane %v847, 2
          %v849 = vadd.f32 %v847, %v848
          %v850 = vrot.slane %v849, 1
          %v851 = vadd.f32 %v849, %v850
          %v852 = vadd.f32 %v822, %v851
          %vm853 = vcmask 516096
          %854 = vst.msk [vmem:[#allocation4] sm:$0x1] %vm853, %v852
          %v855 = vld [vmem:[#allocation5] sm:$0x1]
          %v856 = vmul.f32 %v814, %v814
          %v857 = vmul.f32 %v815, %v815
          %v858 = vmul.f32 %v816, %v816
          %v859 = vmul.f32 %v817, %v817
          %v860 = vmul.f32 %v818, %v818
          %v861 = vmul.f32 %v819, %v819
          %v862 = vmul.f32 %v820, %v820
          %v863 = vmul.f32 %v821, %v821
          %v864 = vadd.f32 %v856, 0.0
          %v865 = vadd.f32 %v857, 0.0
          %v866 = vadd.f32 %v858, 0.0
          %v867 = vadd.f32 %v859, 0.0
          %v868 = vadd.f32 %v860, 0.0
          %v869 = vadd.f32 %v861, 0.0
          %v870 = vadd.f32 %v862, 0.0
          %v871 = vadd.f32 %v863, 0.0
          %v872 = vsel %vm507, %v864, 0.0
          %v873 = vsel %vm507, %v865, 0.0
          %v874 = vadd.f32 %v872, %v873
          %v875 = vsel %vm507, %v866, 0.0
          %v876 = vadd.f32 %v874, %v875
          %v877 = vsel %vm507, %v867, 0.0
          %v878 = vadd.f32 %v876, %v877
          %v879 = vsel %vm507, %v868, 0.0
          %v880 = vadd.f32 %v878, %v879
          %v881 = vsel %vm507, %v869, 0.0
          %v882 = vadd.f32 %v880, %v881
          %v883 = vsel %vm507, %v870, 0.0
          %v884 = vadd.f32 %v882, %v883
          %v885 = vsel %vm507, %v871, 0.0
          %v886 = vadd.f32 %v884, %v885
          %v887 = vrot.slane %v886, 4
          %v888 = vadd.f32 %v886, %v887
          %v889 = vrot.slane %v888, 2
          %v890 = vadd.f32 %v888, %v889
          %v891 = vrot.slane %v890, 1
          %v892 = vadd.f32 %v890, %v891
          %v893 = vadd.f32 %v855, %v892
          %894 = vst.msk [vmem:[#allocation5] sm:$0x1] %vm853, %v893
          %p895 = scmp.eq.s32.totalorder %s28, 1
          // Predicated region
          $region61: #{tpu_custom_call.1} parent=51 // pred_check
            %p896 = pneg %p895
          $region62: #{tpu_custom_call.1} parent=51 // pred_check_branch
            %898 = sbr.rel (%p896) target = $region64
          $region63: #{tpu_custom_call.1} parent=51 // pred_region
            %v899 = vld [vmem:[#allocation4] sm:$0x1]
            %v900 = vmul.f32 %v899, 0.0078125
            %v901 = vld [vmem:[#allocation5] sm:$0x1]
            %v902 = vmul.f32 %v901, 0.0078125
            %v903 = vmul.f32 %v900, %v900
            %v904 = vsub.f32 %v902, %v903
            %v905 = vld [vmem:[#allocation6] sm:$0x1]
            %v906 = vadd.f32 %v900, %v905
            %v907 = vld [vmem:[%s402] sm:$0x1]
            %v908 = vadd.f32 %v904, 1e-05
            %v909 = vrsqrt.pop %v908
            %v910 = vmul.f32 %v909, %v908
            %v911 = vmul.f32 %v910, %v909
            %v912 = vmul.f32 0.5, %v911
            %v913 = vsub.f32 1.5, %v912
            %v914 = vmul.f32 %v909, %v913
            %vm915 = vweird.f32 %v908
            %vm916 = vweird.f32 %v909
            %vm917 = vmor %vm915, %vm916
            %v918 = vsel %vm917, %v909, %v914
            %v919 = vmul.f32 %v907, %v918
            %920 = vst.msk [vmem:[#allocation7] sm:$0x1] %vm853, %v919
            %v921 = vld [vmem:[%s405] sm:$0x1]
            %v922 = vmul.f32 %v906, %v919
            %v923 = vsub.f32 %v921, %v922
            %924 = vst.msk [vmem:[#allocation8] sm:$0x1] %vm853, %v923
          $region64: #{tpu_custom_call.1} parent=51 // pred_fallthru
            _
        $region52: #{tpu_custom_call.1} parent=47 // pred_fallthru
          _
        %p925 = scmp.eq.s32.totalorder %s27, 1
        // Predicated region
        $region65: #{tpu_custom_call.1} parent=47 // pred_check
          %p926 = pneg %p925
        $region66: #{tpu_custom_call.1} parent=47 // pred_check_branch
          %928 = sbr.rel (%p926) target = $region68
        $region67: #{tpu_custom_call.1} parent=47 // pred_region
          %s929 = smul.u32 %s28, 64
          %s930 = scalar_lea.vmem [#allocation3], %s929
          %v931 = vld [vmem:[%s930] sm:$0xff]
          %v932 = vld [vmem:[%s930 + $0x8] sm:$0xff]
          %v933 = vld [vmem:[%s930 + $0x10] sm:$0xff]
          %v934 = vld [vmem:[%s930 + $0x18] sm:$0xff]
          %v935 = vld [vmem:[%s930 + $0x20] sm:$0xff]
          %v936 = vld [vmem:[%s930 + $0x28] sm:$0xff]
          %v937 = vld [vmem:[%s930 + $0x30] sm:$0xff]
          %v938 = vld [vmem:[%s930 + $0x38] sm:$0xff]
          %v939 = vld [vmem:[#allocation7] sm:$0x1]
          %v941 = vperm.slane %v939, 0
          %v943 = vmul.f32 %v931, %v941
          %v944 = vmul.f32 %v932, %v941
          %v945 = vmul.f32 %v933, %v941
          %v946 = vmul.f32 %v934, %v941
          %v947 = vmul.f32 %v935, %v941
          %v948 = vmul.f32 %v936, %v941
          %v949 = vmul.f32 %v937, %v941
          %v950 = vmul.f32 %v938, %v941
          %v951 = vld [vmem:[#allocation8] sm:$0x1]
          %v953 = vperm.slane %v951, 0
          %v955 = vadd.f32 %v943, %v953
          %v956 = vadd.f32 %v944, %v953
          %v957 = vadd.f32 %v945, %v953
          %v958 = vadd.f32 %v946, %v953
          %v959 = vadd.f32 %v947, %v953
          %v960 = vadd.f32 %v948, %v953
          %v961 = vadd.f32 %v949, %v953
          %v962 = vadd.f32 %v950, %v953
          %v963 = vmax.f32 %v955, 0.0
          %v964 = vmax.f32 %v956, 0.0
          %v965 = vmax.f32 %v957, 0.0
          %v966 = vmax.f32 %v958, 0.0
          %v967 = vmax.f32 %v959, 0.0
          %v968 = vmax.f32 %v960, 0.0
          %v969 = vmax.f32 %v961, 0.0
          %v970 = vmax.f32 %v962, 0.0
          %vm971 = vcmask 523264
          %972 = vst.msk [vmem:[%s376] sm:$0xff] %vm971, %v963
          %973 = vst.msk [vmem:[%s376 + $0x8] sm:$0xff] %vm971, %v964
          %974 = vst.msk [vmem:[%s376 + $0x10] sm:$0xff] %vm971, %v965
          %975 = vst.msk [vmem:[%s376 + $0x18] sm:$0xff] %vm971, %v966
          %976 = vst.msk [vmem:[%s376 + $0x20] sm:$0xff] %vm971, %v967
          %977 = vst.msk [vmem:[%s376 + $0x28] sm:$0xff] %vm971, %v968
          %978 = vst.msk [vmem:[%s376 + $0x30] sm:$0xff] %vm971, %v969
          %979 = vst.msk [vmem:[%s376 + $0x38] sm:$0xff] %vm971, %v970
        $region68: #{tpu_custom_call.1} parent=47 // pred_fallthru
          _
        %s980 = sand.u32 %s240, 1
        %s981 = scalar_lea.sflag [#allocation10], %s980
        %s982 = sand.u32 %s240, 1
        %s983 = smul.addr %s982, 64
        %s984 = scalar_lea.vmem [#allocation9], %s983
        // Predicated region
        $region69: #{tpu_custom_call.1} parent=47 // pred_check
          %p985 = pneg %p250
        $region70: #{tpu_custom_call.1} parent=47 // pred_check_branch
          %987 = sbr.rel (%p985) target = $region72
        $region71: #{tpu_custom_call.1} parent=47 // pred_region
          %p988 = scmp.eq.s32.totalorder %s27, 1
          %s989 = scalar_select %p988, %s28, 0
          %991 = vsyncadd %s981, 0
          %s992 = smul.addr %s989, 8
          %s993 = sadd.s32 %s26, %s992
          %s994 = smul.addr %s993, 8
          %s995 = scalar_lea.hbm %s7, %s994
          %s996 = sshll.u32 %s984, 4
          %s997 = int_to_ptr.vmem [resolvable:$true] %s996
          %s998 = sshll.u32 %s995, 4
          %s999 = int_to_ptr.hbm [resolvable:$true] %s998
          %1004 = dma.vmem_to_hbm [thread:$0]  %s997, 1024, %s999, %s981, 128, 128, 8
        $region72: #{tpu_custom_call.1} parent=47 // pred_fallthru
          _
      $region48: #{tpu_custom_call.1} parent=5 // pred_fallthru
        _
      %p1005 = scmp.le.s32.totalorder 2, %s16
      // Predicated region
      $region73: #{tpu_custom_call.1} parent=5 // pred_check
        %p1006 = pneg %p1005
      $region74: #{tpu_custom_call.1} parent=5 // pred_check_branch
        %1008 = sbr.rel (%p1006) target = $region76
      $region75: #{tpu_custom_call.1} parent=5 // pred_region
        %s1009 = ssub.s32 %s16, 2
        // Predicated region
        $region77: #{tpu_custom_call.1} parent=75 // pred_check
          %p1010 = pneg %p256
        $region78: #{tpu_custom_call.1} parent=75 // pred_check_branch
          %1012 = sbr.rel (%p1010) target = $region80
        $region79: #{tpu_custom_call.1} parent=75 // pred_region
          %s1013 = sand.u32 %s241, 1
          %s1014 = scalar_lea.sflag [#allocation10], %s1013
          %s1015 = sand.u32 %s241, 1
          %s1016 = smul.addr %s1015, 64
          %s1017 = scalar_lea.vmem [#allocation9], %s1016
          %1019 = dma.done %s1014, 1024
        $region80: #{tpu_custom_call.1} parent=75 // pred_fallthru
          _
      $region76: #{tpu_custom_call.1} parent=5 // pred_fallthru
        _
    $region6: #{tpu_custom_call.1} parent=1 // loop_footer
      %s20 = sadd.s32 1, %s16
    $region7: #{tpu_custom_call.1} parent=1 // loop_footer_branch
      %15 = sbr.rel target = $region3
    $region8: #{tpu_custom_call.1} parent=1 // loop_exit
      _
    %1020 = vsyncpa [#allocation10], 1
    %s1021 = scalar_lea.sflag [#allocation10], 1
    %1022 = vsyncpa %s1021, 1

</llo_original>
